<compile_context>
chip_gen: v7x
topology: tpu7x:2x2x1
jax: 0.10.0
libtpu: 0.0.40
codegen_flags: <defaults>
</compile_context>

<pallas_src>
import jax
import jax.numpy as jnp
from jax.experimental import pallas as pl
from jax.experimental.pallas import tpu as pltpu

H_DIM = 3
H_DIM2 = 16
Z_DIM = 2
LANES = 128   # lane width: hidden widths all fit in one 128-lane tile
_SUB = 8      # sublane granule


def _round_up(n, m):
    return ((n + m - 1) // m) * m


def _cdiv(a, b):
    return (a + b - 1) // b


# ----------------------------------------------------------------------------
# Kernel
# ----------------------------------------------------------------------------
def bpnet_kernel(xe_ref, w1_ref, w2_ref, w3_ref, out_ref):
    # xe_ref : (TB, Kin) f32 slab, lanes = [ x | 1 | eps0 | eps1 ]
    # w1_ref : (Kin, 128)  packed layer-1 weights (bias folded, eps rows zero)
    # w2_ref : (128, 128)  packed layer-2 weights (bias folded, ones passthrough)
    # w3_ref : (128, 128)  fused mu / log-sigma heads (biases folded)
    # out_ref: (TB, 2) f32
    xe = xe_ref[...]
    kin = xe.shape[1]
    eps = xe[:, kin - Z_DIM:]          # f32, never quantized

    cdt = w1_ref.dtype                 # compute dtype (bf16 by default)
    xc = xe.astype(cdt)

    # Layer 1: relu(x @ W1 + b1).  The "1" lane carries b1 and re-emits itself
    # (h1 lane H_DIM == 1 exactly); the eps lanes hit all-zero W1 rows.
    h1 = jnp.maximum(
        jnp.dot(xc, w1_ref[...], preferred_element_type=jnp.float32), 0.0)

    # Layer 2: relu(h1 @ W2 + b2); enc lane H_DIM2 == 1 exactly.
    enc = jnp.maximum(
        jnp.dot(h1.astype(cdt), w2_ref[...], preferred_element_type=jnp.float32),
        0.0)

    # Fused heads: lanes [0:2] = mu, lanes [2:4] = logvar (biases folded).
    y = jnp.dot(enc.astype(cdt), w3_ref[...], preferred_element_type=jnp.float32)

    mu = y[:, :Z_DIM]
    logvar = y[:, Z_DIM:2 * Z_DIM]
    std = jnp.exp(logvar)              # EUP exp on the 2 useful lanes only
    out_ref[...] = eps * std + mu


# ----------------------------------------------------------------------------
# Host-side packing helpers
# ----------------------------------------------------------------------------
def _pack_weights(params, input_dim, dtype):
    """Bias-folded, head-fused weights in the compute dtype."""
    kin = input_dim + 1 + Z_DIM

    w1p = jnp.zeros((kin, LANES), jnp.float32)
    w1p = w1p.at[:input_dim, :H_DIM].set(params["w1"])
    w1p = w1p.at[input_dim, :H_DIM].set(params["b1"][0])
    w1p = w1p.at[input_dim, H_DIM].set(1.0)          # ones-lane passthrough
    # rows [input_dim+1, input_dim+2] (the eps lanes) stay zero.

    w2p = jnp.zeros((LANES, LANES), jnp.float32)
    w2p = w2p.at[:H_DIM, :H_DIM2].set(params["w2"])
    w2p = w2p.at[H_DIM, :H_DIM2].set(params["b2"][0])
    w2p = w2p.at[H_DIM, H_DIM2].set(1.0)             # ones-lane passthrough

    w3p = jnp.zeros((LANES, LANES), jnp.float32)
    w3p = w3p.at[:H_DIM2, 0:Z_DIM].set(params["wmu"])
    w3p = w3p.at[:H_DIM2, Z_DIM:2 * Z_DIM].set(params["wls"])
    w3p = w3p.at[H_DIM2, 0:Z_DIM].set(params["bmu"][0])
    w3p = w3p.at[H_DIM2, Z_DIM:2 * Z_DIM].set(params["bls"][0])

    return w1p.astype(dtype), w2p.astype(dtype), w3p.astype(dtype)


def _build_slab(x, eps, b_padded):
    """[ x | 1 | eps ] at native width (input_dim + 3 lanes), zero row-pad."""
    B = x.shape[0]
    ones = jnp.ones((B, 1), jnp.float32)
    xe = jnp.concatenate(
        [x.astype(jnp.float32), ones, eps.astype(jnp.float32)], axis=1)
    if b_padded != B:
        xe = jnp.pad(xe, ((0, b_padded - B), (0, 0)))
    return xe


def _choose_batch_tile(B, block_b, min_blocks):
    """Pick (tile, num_blocks): >= min_blocks blocks when B is big enough
    (v7x megacore), each block <= block_b, and minimal batch-padding waste."""
    want = max(min_blocks if B >= 2 * _SUB else 1, _cdiv(B, block_b))
    tb = _round_up(_cdiv(B, want), _SUB)
    nb = _cdiv(B, tb)
    return tb, nb


# ----------------------------------------------------------------------------
# Wrapper
# ----------------------------------------------------------------------------
def bpnet_forward(x, params, eps, *, block_b=8192, min_blocks=2,
                  compute_dtype=jnp.bfloat16,
                  vmem_limit_bytes=48 * 1024 * 1024):
    """x: (B, input_dim) f32, eps: (B, 2) f32, params: dict of weights/biases.

    compute_dtype=jnp.bfloat16 (default) runs the three MXU dots with bf16
    operands and f32 accumulation (single-pass MXU on v5e/v6e/v7x);
    compute_dtype=jnp.float32 keeps full f32 numerics.
    """
    B, input_dim = x.shape
    kin = input_dim + 1 + Z_DIM
    # TODO(synk): K-tiling of the first matmul for input_dim + 3 > 128.
    assert kin <= LANES, "input_dim must be <= 125 for this packing"

    w1p, w2p, w3p = _pack_weights(params, input_dim, compute_dtype)

    tb, nb = _choose_batch_tile(B, block_b, min_blocks)
    b_padded = tb * nb
    xe = _build_slab(x, eps, b_padded)

    out = pl.pallas_call(
        bpnet_kernel,
        out_shape=jax.ShapeDtypeStruct((b_padded, Z_DIM), jnp.float32),
        grid=(nb,),
        in_specs=[
            # streamed slab at native width (last dim == full array dim)
            pl.BlockSpec((tb, kin), lambda i: (i, 0)),
            # resident packed weights (constant block index -> DMA'd once)
            pl.BlockSpec((kin, LANES), lambda i: (0, 0)),
            pl.BlockSpec((LANES, LANES), lambda i: (0, 0)),
            pl.BlockSpec((LANES, LANES), lambda i: (0, 0)),
        ],
        out_specs=pl.BlockSpec((tb, Z_DIM), lambda i: (i, 0)),
        compiler_params=pltpu.CompilerParams(
            dimension_semantics=("parallel",),
            vmem_limit_bytes=vmem_limit_bytes),
    )(xe, w1p, w2p, w3p)

    return out[:B]


# ----------------------------------------------------------------------------
# Parameter init + pure-JAX references
# ----------------------------------------------------------------------------
def init_params(key, input_dim):
    """nn.Linear-style init; weights stored transposed as (in, out)."""
    ks = jax.random.split(key, 8)

    def linear(kw, kb, fan_in, fan_out):
        bound = 1.0 / jnp.sqrt(fan_in)
        w = jax.random.uniform(kw, (fan_in, fan_out), jnp.float32, -bound, bound)
        b = jax.random.uniform(kb, (1, fan_out), jnp.float32, -bound, bound)
        return w, b

    w1, b1 = linear(ks[0], ks[1], input_dim, H_DIM)     # self.w
    w2, b2 = linear(ks[2], ks[3], H_DIM, H_DIM2)        # self.w2
    wmu, bmu = linear(ks[4], ks[5], H_DIM2, Z_DIM)      # self._enc_mu
    wls, bls = linear(ks[6], ks[7], H_DIM2, Z_DIM)      # self._enc_log_sigma
    return dict(w1=w1, b1=b1, w2=w2, b2=b2, wmu=wmu, bmu=bmu, wls=wls, bls=bls)


def bpnet_reference(x, params, eps):
    """Pure-JAX f32 reference of the PyTorch forward pass."""
    h1 = jnp.maximum(x @ params["w1"] + params["b1"], 0.0)
    enc = jnp.maximum(h1 @ params["w2"] + params["b2"], 0.0)
    mu = enc @ params["wmu"] + params["bmu"]
    std = jnp.exp(enc @ params["wls"] + params["bls"])
    return eps * std + mu


def bpnet_reference_quantized(x, params, eps, dtype):
    """Reference mirroring the kernel's cast points: dot operands (and the
    folded biases) quantized to `dtype`, f32 accumulation, eps kept f32."""
    f32 = jnp.float32
    q = lambda a: a.astype(dtype)
    h1 = jnp.maximum(
        jnp.dot(q(x), q(params["w1"]), preferred_element_type=f32)
        + q(params["b1"]).astype(f32), 0.0)
    enc = jnp.maximum(
        jnp.dot(q(h1), q(params["w2"]), preferred_element_type=f32)
        + q(params["b2"]).astype(f32), 0.0)
    mu = (jnp.dot(q(enc), q(params["wmu"]), preferred_element_type=f32)
          + q(params["bmu"]).astype(f32))
    lv = (jnp.dot(q(enc), q(params["wls"]), preferred_element_type=f32)
          + q(params["bls"]).astype(f32))
    return eps * jnp.exp(lv) + mu


if __name__ == "__main__":
    key = jax.random.PRNGKey(0)
    k_par, k_x, k_eps, k_x2, k_eps2 = jax.random.split(key, 5)

    input_dim = 16
    params = init_params(k_par, input_dim)

    # --- f32 compute path vs. the exact f32 reference -----------------------
    # batch=1024 -> 2 grid blocks of 512 rows (exercises the grid / megacore
    # path).  Tolerance 1e-4 covers f32 MXU emulation + transcendental-ULP
    # differences over 2048 samples.
    batch = 1024
    x = jax.random.normal(k_x, (batch, input_dim), dtype=jnp.float32)
    eps = jax.random.normal(k_eps, (batch, Z_DIM), dtype=jnp.float32)

    out_f32 = jax.block_until_ready(
        bpnet_forward(x, params, eps, compute_dtype=jnp.float32))
    ref = bpnet_reference(x, params, eps)
    assert out_f32.shape == (batch, Z_DIM)
    assert jnp.allclose(out_f32, ref, atol=1e-4, rtol=1e-4), \
        "f32 kernel mismatch vs pure-JAX reference"

    # --- default bf16-MXU path vs. a bf16-quantized reference ---------------
    out_bf16 = jax.block_until_ready(bpnet_forward(x, params, eps))
    ref_q = bpnet_reference_quantized(x, params, eps, jnp.bfloat16)
    assert jnp.allclose(out_bf16, ref_q, atol=1e-2, rtol=1e-2), \
        "bf16 kernel mismatch vs bf16-quantized reference"

    # --- awkward batch size (exercises the pad-and-slice + TB selection) ----
    batch2 = 1000
    x2 = jax.random.normal(k_x2, (batch2, input_dim), dtype=jnp.float32)
    eps2 = jax.random.normal(k_eps2, (batch2, Z_DIM), dtype=jnp.float32)
    out2 = jax.block_until_ready(
        bpnet_forward(x2, params, eps2, compute_dtype=jnp.float32))
    ref2 = bpnet_reference(x2, params, eps2)
    assert out2.shape == (batch2, Z_DIM)
    assert jnp.allclose(out2, ref2, atol=1e-4, rtol=1e-4), \
        "padded-batch f32 kernel mismatch vs pure-JAX reference"

    print("KERNEL_OK")
</pallas_src>

<mosaic_0001>
module attributes {stable_mosaic.version = 11 : i64} {
  func.func @bpnet_kernel(%arg0: i32, %arg1: memref<512x19xf32, #tpu.memory_space<vmem>>, %arg2: memref<19x128xf32, #tpu.memory_space<vmem>>, %arg3: memref<128x128xf32, #tpu.memory_space<vmem>>, %arg4: memref<128x128xf32, #tpu.memory_space<vmem>>, %arg5: memref<512x2xf32, #tpu.memory_space<vmem>>) attributes {dimension_semantics = [#tpu.dimension_semantics<parallel>], iteration_bounds = array<i64: 2>, scalar_prefetch = 0 : i64, scratch_operands = 0 : i64, tpu.core_type = #tpu.core_type<tc>, window_params = [{transform_indices = @transform_0, window_bounds = array<i64: 512, 19>}, {pipeline_mode = #tpu.pipeline_mode<synchronous>, transform_indices = @transform_1, window_bounds = array<i64: 19, 128>}, {pipeline_mode = #tpu.pipeline_mode<synchronous>, transform_indices = @transform_2, window_bounds = array<i64: 128, 128>}, {pipeline_mode = #tpu.pipeline_mode<synchronous>, transform_indices = @transform_3, window_bounds = array<i64: 128, 128>}, {transform_indices = @transform_4, window_bounds = array<i64: 512, 2>}]} {
    %c0 = arith.constant 0 : index
    %c0_0 = arith.constant 0 : index
    %0 = vector.load %arg1[%c0, %c0_0] : memref<512x19xf32, #tpu.memory_space<vmem>>, vector<512x19xf32>
    %1 = vector.extract_strided_slice %0 {offsets = [0, 17], sizes = [512, 2], strides = [1, 1]} : vector<512x19xf32> to vector<512x2xf32>
    %c0_1 = arith.constant 0 : index
    %c0_2 = arith.constant 0 : index
    %2 = vector.load %arg2[%c0_1, %c0_2] : memref<19x128xf32, #tpu.memory_space<vmem>>, vector<19x128xf32>
    %cst = arith.constant dense<0.000000e+00> : vector<512x128xf32>
    %3 = tpu.matmul %0, %2, %cst {dimension_numbers = #tpu.dot_dimension_numbers<[1], [0], [0], [1], [0, 0, 1, 1], [], []>} : vector<512x19xf32>, vector<19x128xf32>, vector<512x128xf32> -> vector<512x128xf32>
    %cst_3 = arith.constant 0.000000e+00 : f32
    %4 = vector.broadcast %cst_3 : f32 to vector<512x128xf32>
    %5 = arith.maximumf %3, %4 : vector<512x128xf32>
    %c0_4 = arith.constant 0 : index
    %c0_5 = arith.constant 0 : index
    %6 = vector.load %arg3[%c0_4, %c0_5] : memref<128x128xf32, #tpu.memory_space<vmem>>, vector<128x128xf32>
    %cst_6 = arith.constant dense<0.000000e+00> : vector<512x128xf32>
    %7 = tpu.matmul %5, %6, %cst_6 {dimension_numbers = #tpu.dot_dimension_numbers<[1], [0], [0], [1], [0, 0, 1, 1], [], []>} : vector<512x128xf32>, vector<128x128xf32>, vector<512x128xf32> -> vector<512x128xf32>
    %cst_7 = arith.constant 0.000000e+00 : f32
    %8 = vector.broadcast %cst_7 : f32 to vector<512x128xf32>
    %9 = arith.maximumf %7, %8 : vector<512x128xf32>
    %c0_8 = arith.constant 0 : index
    %c0_9 = arith.constant 0 : index
    %10 = vector.load %arg4[%c0_8, %c0_9] : memref<128x128xf32, #tpu.memory_space<vmem>>, vector<128x128xf32>
    %cst_10 = arith.constant dense<0.000000e+00> : vector<512x128xf32>
    %11 = tpu.matmul %9, %10, %cst_10 {dimension_numbers = #tpu.dot_dimension_numbers<[1], [0], [0], [1], [0, 0, 1, 1], [], []>} : vector<512x128xf32>, vector<128x128xf32>, vector<512x128xf32> -> vector<512x128xf32>
    %12 = vector.extract_strided_slice %11 {offsets = [0, 0], sizes = [512, 2], strides = [1, 1]} : vector<512x128xf32> to vector<512x2xf32>
    %13 = vector.extract_strided_slice %11 {offsets = [0, 2], sizes = [512, 2], strides = [1, 1]} : vector<512x128xf32> to vector<512x2xf32>
    %14 = math.exp %13 : vector<512x2xf32>
    %15 = arith.mulf %1, %14 : vector<512x2xf32>
    %16 = arith.addf %15, %12 : vector<512x2xf32>
    %c0_11 = arith.constant 0 : index
    %c0_12 = arith.constant 0 : index
    %17 = vector.load %arg5[%c0_11, %c0_12] : memref<512x2xf32, #tpu.memory_space<vmem>>, vector<512x2xf32>
    tpu.vector_store %arg5[%c0_11, %c0_12], %16 {strides = array<i32>} : memref<512x2xf32, #tpu.memory_space<vmem>>, vector<512x2xf32>,
    return
  }
  func.func @transform_0(%arg0: i32) -> (i32, i32) {
    %c0_i32 = arith.constant 0 : i32
    %c0_i32_0 = arith.constant 0 : i32
    return %arg0, %c0_i32 : i32, i32
  }
  func.func @transform_1(%arg0: i32) -> (i32, i32) {
    %c0_i32 = arith.constant 0 : i32
    %c0_i32_0 = arith.constant 0 : i32
    %c0_i32_1 = arith.constant 0 : i32
    return %c0_i32, %c0_i32_0 : i32, i32
  }
  func.func @transform_2(%arg0: i32) -> (i32, i32) {
    %c0_i32 = arith.constant 0 : i32
    %c0_i32_0 = arith.constant 0 : i32
    %c0_i32_1 = arith.constant 0 : i32
    return %c0_i32, %c0_i32_0 : i32, i32
  }
  func.func @transform_3(%arg0: i32) -> (i32, i32) {
    %c0_i32 = arith.constant 0 : i32
    %c0_i32_0 = arith.constant 0 : i32
    %c0_i32_1 = arith.constant 0 : i32
    return %c0_i32, %c0_i32_0 : i32, i32
  }
  func.func @transform_4(%arg0: i32) -> (i32, i32) {
    %c0_i32 = arith.constant 0 : i32
    %c0_i32_0 = arith.constant 0 : i32
    return %arg0, %c0_i32 : i32, i32
  }
}

</mosaic_0001>

<llo_original>
// kernel: tpu_custom_call.1
$region0: #{tpu_custom_call.1}
  #allocation0 [shape = 'u32[]', space=smem, size = 0x4, offset = 0x4, fixed_abs, tag = 'smem constant byte address 0x4 - core index']
  #allocation1 [shape = 'u32[144,128]{1,0:T(1,128)}', space=vmem, size = 0x12000, scoped, tag = 'internal scratch']
  %s0 = inlined_call_operand.vmem [shape: f32[1024,19], index: 0, kind: input, shape index: {}]
  %s1 = inlined_call_operand.vmem [shape: f32[19,128], index: 1, kind: input, shape index: {}]
  %s2 = inlined_call_operand.vmem [shape: f32[128,128], index: 2, kind: input, shape index: {}]
  %s3 = inlined_call_operand.vmem [shape: f32[128,128], index: 3, kind: input, shape index: {}]
  %s4 = inlined_call_operand.vmem [shape: f32[1024,2], index: 4, kind: output, shape index: {}]
  %s5 = sld [smem:[#allocation0]]
  $region49: #{tpu_custom_call.1} parent=0
    _
  %s7 = ssub.s32 1, %s5
  %s8 = scalar_select 0, %s7, %s5
  loop: start=0, step=1, limit=4
  $region2: #{tpu_custom_call.1} parent=0 // loop_pre_header
    _
  $region3: #{tpu_custom_call.1} parent=0 // loop_header
    %s10 = sphi 0, %s14
    %p11 = scmp.ge.s32.totalorder %s10, 4
    %s20 = sphi 0, %s22
    %s23 = sphi 0, %s20
    %s24 = sphi 0, %s23
    %s40 = sphi 0, %s24
    %s44 = sphi 0, %s44
    %s46 = sphi 0, %s44
    %s47 = sphi 0, %s46
    %s61 = sphi 0, %s47
    %s65 = sphi 0, %s65
    %s67 = sphi 0, %s65
    %s68 = sphi 0, %s67
    %s82 = sphi 0, %s68
    %s86 = sphi 0, %s86
    %s88 = sphi 0, %s86
    %s89 = sphi 0, %s88
    %s103 = sphi 0, %s89
    %s109 = sphi 0, %s111
    %s112 = sphi 0, %s109
    %s113 = sphi 0, %s112
    %s129 = sphi 0, %s113
  $region4: #{tpu_custom_call.1} parent=0 // loop_header_branch
    %13 = sbr.rel (%p11) target = $region8
  $region5: #{tpu_custom_call.1} parent=0 // loop_body
    %s15 = ssub.s32 %s10, 1
    %s16 = ssub.s32 %s10, 2
    %s17 = sadd.s32 %s10, 1
    %s18 = ssub.s32 %s10, %s17
    %p19 = scmp.eq.s32.totalorder %s18, 0
    %s21 = sadd.s32 %s20, 1
    %s22 = scalar_select %p19, %s20, %s21
    %p25 = pneg %p19
    %p26 = scmp.eq.s32.totalorder %s10, 1
    %p27 = por %p25, %p26
    %p28 = scmp.ne.s32.totalorder %s20, %s23
    %p29 = scmp.eq.s32.totalorder %s10, 0
    %p30 = por %p28, %p29
    %p31 = scmp.ne.s32.totalorder %s20, %s23
    %p32 = scmp.eq.s32.totalorder %s15, 1
    %p33 = por %p31, %p32
    %p34 = scmp.ne.s32.totalorder %s23, %s24
    %p35 = scmp.eq.s32.totalorder %s15, 0
    %p36 = por %p34, %p35
    %p37 = scmp.ne.s32.totalorder %s23, %s24
    %p38 = scmp.eq.s32.totalorder %s16, 1
    %p39 = por %p37, %p38
    %p41 = scmp.ne.s32.totalorder %s24, %s40
    %p42 = scmp.eq.s32.totalorder %s16, 0
    %p43 = por %p41, %p42
    %s45 = sadd.s32 %s44, 1
    %p48 = scmp.eq.s32.totalorder %s10, 1
    %p49 = scmp.ne.s32.totalorder %s44, %s46
    %p50 = scmp.eq.s32.totalorder %s10, 0
    %p51 = por %p49, %p50
    %p52 = scmp.ne.s32.totalorder %s44, %s46
    %p53 = scmp.eq.s32.totalorder %s15, 1
    %p54 = por %p52, %p53
    %p55 = scmp.ne.s32.totalorder %s46, %s47
    %p56 = scmp.eq.s32.totalorder %s15, 0
    %p57 = por %p55, %p56
    %p58 = scmp.ne.s32.totalorder %s46, %s47
    %p59 = scmp.eq.s32.totalorder %s16, 1
    %p60 = por %p58, %p59
    %p62 = scmp.ne.s32.totalorder %s47, %s61
    %p63 = scmp.eq.s32.totalorder %s16, 0
    %p64 = por %p62, %p63
    %s66 = sadd.s32 %s65, 1
    %p69 = scmp.eq.s32.totalorder %s10, 1
    %p70 = scmp.ne.s32.totalorder %s65, %s67
    %p71 = scmp.eq.s32.totalorder %s10, 0
    %p72 = por %p70, %p71
    %p73 = scmp.ne.s32.totalorder %s65, %s67
    %p74 = scmp.eq.s32.totalorder %s15, 1
    %p75 = por %p73, %p74
    %p76 = scmp.ne.s32.totalorder %s67, %s68
    %p77 = scmp.eq.s32.totalorder %s15, 0
    %p78 = por %p76, %p77
    %p79 = scmp.ne.s32.totalorder %s67, %s68
    %p80 = scmp.eq.s32.totalorder %s16, 1
    %p81 = por %p79, %p80
    %p83 = scmp.ne.s32.totalorder %s68, %s82
    %p84 = scmp.eq.s32.totalorder %s16, 0
    %p85 = por %p83, %p84
    %s87 = sadd.s32 %s86, 1
    %p90 = scmp.eq.s32.totalorder %s10, 1
    %p91 = scmp.ne.s32.totalorder %s86, %s88
    %p92 = scmp.eq.s32.totalorder %s10, 0
    %p93 = por %p91, %p92
    %p94 = scmp.ne.s32.totalorder %s86, %s88
    %p95 = scmp.eq.s32.totalorder %s15, 1
    %p96 = por %p94, %p95
    %p97 = scmp.ne.s32.totalorder %s88, %s89
    %p98 = scmp.eq.s32.totalorder %s15, 0
    %p99 = por %p97, %p98
    %p100 = scmp.ne.s32.totalorder %s88, %s89
    %p101 = scmp.eq.s32.totalorder %s16, 1
    %p102 = por %p100, %p101
    %p104 = scmp.ne.s32.totalorder %s89, %s103
    %p105 = scmp.eq.s32.totalorder %s16, 0
    %p106 = por %p104, %p105
    %s107 = ssub.s32 %s10, %s17
    %p108 = scmp.eq.s32.totalorder %s107, 0
    %s110 = sadd.s32 %s109, 1
    %s111 = scalar_select %p108, %s109, %s110
    %p114 = pneg %p108
    %p115 = scmp.eq.s32.totalorder %s10, 1
    %p116 = por %p114, %p115
    %p117 = scmp.ne.s32.totalorder %s109, %s112
    %p118 = scmp.eq.s32.totalorder %s10, 0
    %p119 = por %p117, %p118
    %p120 = scmp.ne.s32.totalorder %s109, %s112
    %p121 = scmp.eq.s32.totalorder %s15, 1
    %p122 = por %p120, %p121
    %p123 = scmp.ne.s32.totalorder %s112, %s113
    %p124 = scmp.eq.s32.totalorder %s15, 0
    %p125 = por %p123, %p124
    %p126 = scmp.ne.s32.totalorder %s112, %s113
    %p127 = scmp.eq.s32.totalorder %s16, 1
    %p128 = por %p126, %p127
    %p130 = scmp.ne.s32.totalorder %s113, %s129
    %p131 = scmp.eq.s32.totalorder %s16, 0
    %p132 = por %p130, %p131
    %p133 = scmp.le.s32.totalorder 1, %s10
    %p134 = scmp.lt.s32.totalorder %s10, 3
    %p135 = pnand %p133, %p134
    %p136 = pneg %p135
    // Predicated region
    $region9: #{tpu_custom_call.1} parent=5 // pred_check
      _
    $region10: #{tpu_custom_call.1} parent=5 // pred_check_branch
      %138 = sbr.rel (%p135) target = $region12
    $region11: #{tpu_custom_call.1} parent=5 // pred_region
      %s139 = ssub.s32 %s10, 1
      // Predicated region
      $region13: #{tpu_custom_call.1} parent=11 // pred_check
        %p140 = pneg %p57
      $region14: #{tpu_custom_call.1} parent=11 // pred_check_branch
        %142 = sbr.rel (%p140) target = $region16
      $region15: #{tpu_custom_call.1} parent=11 // pred_region
        _
      $region16: #{tpu_custom_call.1} parent=11 // pred_fallthru
        _
      // Predicated region
      $region17: #{tpu_custom_call.1} parent=11 // pred_check
        %p143 = pneg %p78
      $region18: #{tpu_custom_call.1} parent=11 // pred_check_branch
        %145 = sbr.rel (%p143) target = $region20
      $region19: #{tpu_custom_call.1} parent=11 // pred_region
        _
      $region20: #{tpu_custom_call.1} parent=11 // pred_fallthru
        _
      // Predicated region
      $region21: #{tpu_custom_call.1} parent=11 // pred_check
        %p146 = pneg %p99
      $region22: #{tpu_custom_call.1} parent=11 // pred_check_branch
        %148 = sbr.rel (%p146) target = $region24
      $region23: #{tpu_custom_call.1} parent=11 // pred_region
        _
      $region24: #{tpu_custom_call.1} parent=11 // pred_fallthru
        _
    $region12: #{tpu_custom_call.1} parent=5 // pred_fallthru
      _
    %p149 = scmp.lt.s32.totalorder %s10, 2
    // Predicated region
    $region25: #{tpu_custom_call.1} parent=5 // pred_check
      %p150 = pneg %p149
    $region26: #{tpu_custom_call.1} parent=5 // pred_check_branch
      %152 = sbr.rel (%p150) target = $region28
    $region27: #{tpu_custom_call.1} parent=5 // pred_region
      // Predicated region
      $region29: #{tpu_custom_call.1} parent=27 // pred_check
        %p153 = pneg %p30
      $region30: #{tpu_custom_call.1} parent=27 // pred_check_branch
        %155 = sbr.rel (%p153) target = $region32
      $region31: #{tpu_custom_call.1} parent=27 // pred_region
        %s156 = smul.u32 64, %s10
        %p157 = scmp.lt.s32.totalorder %s156, 127
        %s158 = scalar_select %p157, %s156, 127
        %s159 = smul.addr %s158, 8
        %s160 = scalar_lea.vmem %s0, %s159
        %s161 = smul.u32 64, %s10
      $region32: #{tpu_custom_call.1} parent=27 // pred_fallthru
        _
    $region28: #{tpu_custom_call.1} parent=5 // pred_fallthru
      _
    %p162 = scmp.le.s32.totalorder 1, %s10
    %p163 = scmp.lt.s32.totalorder %s10, 3
    %p164 = pnand %p162, %p163
    %p165 = pneg %p164
    // Predicated region
    $region33: #{tpu_custom_call.1} parent=5 // pred_check
      _
    $region34: #{tpu_custom_call.1} parent=5 // pred_check_branch
      %167 = sbr.rel (%p164) target = $region36
    $region35: #{tpu_custom_call.1} parent=5 // pred_region
      %s168 = ssub.s32 %s10, 1
      %s169 = smul.u32 64, %s15
      %p170 = scmp.lt.s32.totalorder %s169, 127
      %s171 = scalar_select %p170, %s169, 127
      %s172 = smul.addr %s171, 8
      %s173 = scalar_lea.vmem %s0, %s172
      %p174 = pneg %p36
      %p175 = pneg %p33
      %p176 = pneg %p57
      %p177 = pneg %p54
      %p178 = pneg %p78
      %p179 = pneg %p75
      %p180 = pneg %p99
      %p181 = pneg %p96
      %p182 = pneg %p125
      %p183 = pneg %p122
      %s184 = smul.u32 64, %s15
      %p185 = scmp.lt.s32.totalorder %s184, 127
      %s186 = scalar_select %p185, %s184, 127
      %s187 = smul.addr %s186, 8
      %s188 = scalar_lea.vmem %s4, %s187
      %s189 = smul.u32 64, %s15
      %p190 = scmp.lt.s32.totalorder %s189, 127
      %s191 = scalar_select %p190, %s189, 127
      %s192 = smul.addr %s191, 8
      %s193 = scalar_lea.vmem %s0, %s192
      %s194 = smul.u32 64, %s15
      %s195 = smul.u32 64, %s15
      %p196 = scmp.lt.s32.totalorder %s195, 127
      %s197 = scalar_select %p196, %s195, 127
      %s198 = smul.addr %s197, 8
      %s199 = scalar_lea.vmem %s4, %s198
      %s200 = smul.u32 64, %s15
      %v201 = vld [vmem:[%s193] sm:$0xff]
      %v202 = vld [vmem:[%s193 + $0x8] sm:$0xff]
      %v203 = vld [vmem:[%s193 + $0x10] sm:$0xff]
      %v204 = vld [vmem:[%s193 + $0x18] sm:$0xff]
      %v205 = vld [vmem:[%s193 + $0x20] sm:$0xff]
      %v206 = vld [vmem:[%s193 + $0x28] sm:$0xff]
      %v207 = vld [vmem:[%s193 + $0x30] sm:$0xff]
      %v208 = vld [vmem:[%s193 + $0x38] sm:$0xff]
      %v209 = vld [vmem:[%s193 + $0x40] sm:$0xff]
      %v210 = vld [vmem:[%s193 + $0x48] sm:$0xff]
      %v211 = vld [vmem:[%s193 + $0x50] sm:$0xff]
      %v212 = vld [vmem:[%s193 + $0x58] sm:$0xff]
      %v213 = vld [vmem:[%s193 + $0x60] sm:$0xff]
      %v214 = vld [vmem:[%s193 + $0x68] sm:$0xff]
      %v215 = vld [vmem:[%s193 + $0x70] sm:$0xff]
      %v216 = vld [vmem:[%s193 + $0x78] sm:$0xff]
      %v217 = vld [vmem:[%s193 + $0x80] sm:$0xff]
      %v218 = vld [vmem:[%s193 + $0x88] sm:$0xff]
      %v219 = vld [vmem:[%s193 + $0x90] sm:$0xff]
      %v220 = vld [vmem:[%s193 + $0x98] sm:$0xff]
      %v221 = vld [vmem:[%s193 + $0xa0] sm:$0xff]
      %v222 = vld [vmem:[%s193 + $0xa8] sm:$0xff]
      %v223 = vld [vmem:[%s193 + $0xb0] sm:$0xff]
      %v224 = vld [vmem:[%s193 + $0xb8] sm:$0xff]
      %v225 = vld [vmem:[%s193 + $0xc0] sm:$0xff]
      %v226 = vld [vmem:[%s193 + $0xc8] sm:$0xff]
      %v227 = vld [vmem:[%s193 + $0xd0] sm:$0xff]
      %v228 = vld [vmem:[%s193 + $0xd8] sm:$0xff]
      %v229 = vld [vmem:[%s193 + $0xe0] sm:$0xff]
      %v230 = vld [vmem:[%s193 + $0xe8] sm:$0xff]
      %v231 = vld [vmem:[%s193 + $0xf0] sm:$0xff]
      %v232 = vld [vmem:[%s193 + $0xf8] sm:$0xff]
      %v233 = vld [vmem:[%s193 + $0x100] sm:$0xff]
      %v234 = vld [vmem:[%s193 + $0x108] sm:$0xff]
      %v235 = vld [vmem:[%s193 + $0x110] sm:$0xff]
      %v236 = vld [vmem:[%s193 + $0x118] sm:$0xff]
      %v237 = vld [vmem:[%s193 + $0x120] sm:$0xff]
      %v238 = vld [vmem:[%s193 + $0x128] sm:$0xff]
      %v239 = vld [vmem:[%s193 + $0x130] sm:$0xff]
      %v240 = vld [vmem:[%s193 + $0x138] sm:$0xff]
      %v241 = vld [vmem:[%s193 + $0x140] sm:$0xff]
      %v242 = vld [vmem:[%s193 + $0x148] sm:$0xff]
      %v243 = vld [vmem:[%s193 + $0x150] sm:$0xff]
      %v244 = vld [vmem:[%s193 + $0x158] sm:$0xff]
      %v245 = vld [vmem:[%s193 + $0x160] sm:$0xff]
      %v246 = vld [vmem:[%s193 + $0x168] sm:$0xff]
      %v247 = vld [vmem:[%s193 + $0x170] sm:$0xff]
      %v248 = vld [vmem:[%s193 + $0x178] sm:$0xff]
      %v249 = vld [vmem:[%s193 + $0x180] sm:$0xff]
      %v250 = vld [vmem:[%s193 + $0x188] sm:$0xff]
      %v251 = vld [vmem:[%s193 + $0x190] sm:$0xff]
      %v252 = vld [vmem:[%s193 + $0x198] sm:$0xff]
      %v253 = vld [vmem:[%s193 + $0x1a0] sm:$0xff]
      %v254 = vld [vmem:[%s193 + $0x1a8] sm:$0xff]
      %v255 = vld [vmem:[%s193 + $0x1b0] sm:$0xff]
      %v256 = vld [vmem:[%s193 + $0x1b8] sm:$0xff]
      %v257 = vld [vmem:[%s193 + $0x1c0] sm:$0xff]
      %v258 = vld [vmem:[%s193 + $0x1c8] sm:$0xff]
      %v259 = vld [vmem:[%s193 + $0x1d0] sm:$0xff]
      %v260 = vld [vmem:[%s193 + $0x1d8] sm:$0xff]
      %v261 = vld [vmem:[%s193 + $0x1e0] sm:$0xff]
      %v262 = vld [vmem:[%s193 + $0x1e8] sm:$0xff]
      %v263 = vld [vmem:[%s193 + $0x1f0] sm:$0xff]
      %v264 = vld [vmem:[%s193 + $0x1f8] sm:$0xff]
      %v265 = vld [vmem:[%s1] sm:$0xff]
      %v266 = vld [vmem:[%s1 + $0x8] sm:$0xff]
      %v267 = vld [vmem:[%s1 + $0x10] sm:$0x7]
      %vm268 = vcmask 154624
      %v270 = vsel %vm268, %v201, 0
      %v273 = vsel %vm268, %v202, 0
      %v276 = vsel %vm268, %v203, 0
      %v279 = vsel %vm268, %v204, 0
      %v282 = vsel %vm268, %v205, 0
      %v285 = vsel %vm268, %v206, 0
      %v288 = vsel %vm268, %v207, 0
      %v291 = vsel %vm268, %v208, 0
      %v294 = vsel %vm268, %v209, 0
      %v297 = vsel %vm268, %v210, 0
      %v300 = vsel %vm268, %v211, 0
      %v303 = vsel %vm268, %v212, 0
      %v306 = vsel %vm268, %v213, 0
      %v309 = vsel %vm268, %v214, 0
      %v312 = vsel %vm268, %v215, 0
      %v315 = vsel %vm268, %v216, 0
      %v318 = vsel %vm268, %v217, 0
      %v321 = vsel %vm268, %v218, 0
      %v324 = vsel %vm268, %v219, 0
      %v327 = vsel %vm268, %v220, 0
      %v330 = vsel %vm268, %v221, 0
      %v333 = vsel %vm268, %v222, 0
      %v336 = vsel %vm268, %v223, 0
      %v339 = vsel %vm268, %v224, 0
      %v342 = vsel %vm268, %v225, 0
      %v345 = vsel %vm268, %v226, 0
      %v348 = vsel %vm268, %v227, 0
      %v351 = vsel %vm268, %v228, 0
      %v354 = vsel %vm268, %v229, 0
      %v357 = vsel %vm268, %v230, 0
      %v360 = vsel %vm268, %v231, 0
      %v363 = vsel %vm268, %v232, 0
      %v366 = vsel %vm268, %v233, 0
      %v369 = vsel %vm268, %v234, 0
      %v372 = vsel %vm268, %v235, 0
      %v375 = vsel %vm268, %v236, 0
      %v378 = vsel %vm268, %v237, 0
      %v381 = vsel %vm268, %v238, 0
      %v384 = vsel %vm268, %v239, 0
      %v387 = vsel %vm268, %v240, 0
      %v390 = vsel %vm268, %v241, 0
      %v393 = vsel %vm268, %v242, 0
      %v396 = vsel %vm268, %v243, 0
      %v399 = vsel %vm268, %v244, 0
      %v402 = vsel %vm268, %v245, 0
      %v405 = vsel %vm268, %v246, 0
      %v408 = vsel %vm268, %v247, 0
      %v411 = vsel %vm268, %v248, 0
      %v414 = vsel %vm268, %v249, 0
      %v417 = vsel %vm268, %v250, 0
      %v420 = vsel %vm268, %v251, 0
      %v423 = vsel %vm268, %v252, 0
      %v426 = vsel %vm268, %v253, 0
      %v429 = vsel %vm268, %v254, 0
      %v432 = vsel %vm268, %v255, 0
      %v435 = vsel %vm268, %v256, 0
      %v438 = vsel %vm268, %v257, 0
      %v441 = vsel %vm268, %v258, 0
      %v444 = vsel %vm268, %v259, 0
      %v447 = vsel %vm268, %v260, 0
      %v450 = vsel %vm268, %v261, 0
      %v453 = vsel %vm268, %v262, 0
      %v456 = vsel %vm268, %v263, 0
      %v459 = vsel %vm268, %v264, 0
      %vm461 = vcmask 1042432
      %v463 = vsel %vm461, %v267, 0
      %465 = vmatprep.subr.mxu0 0.0
      %466 = vmatpush1.msra.mxu0 %v265
      %467 = vmatprep.subr.mxu0 0.0
      %468 = vmatpush1.msra.mxu0 %v266
      %469 = vmatprep.subr.mxu0 0.0
      %470 = vmatpush1.msra.mxu0 %v463
      %471 = vmatprep.subr.mxu0 0.0
      %472 = vmatpush1.msra.mxu0 0.0
      %473 = vmatprep.subr.mxu0 0.0
      %474 = vmatpush1.msra.mxu0 0.0
      %475 = vmatprep.subr.mxu0 0.0
      %476 = vmatpush1.msra.mxu0 0.0
      %477 = vmatprep.subr.mxu0 0.0
      %478 = vmatpush1.msra.mxu0 0.0
      %479 = vmatprep.subr.mxu0 0.0
      %480 = vmatpush1.msra.mxu0 0.0
      %481 = vmatprep.subr.mxu0 0.0
      %482 = vmatpush1.msra.mxu0 0.0
      %483 = vmatprep.subr.mxu0 0.0
      %484 = vmatpush1.msra.mxu0 0.0
      %485 = vmatprep.subr.mxu0 0.0
      %486 = vmatpush1.msra.mxu0 0.0
      %487 = vmatprep.subr.mxu0 0.0
      %488 = vmatpush1.msra.mxu0 0.0
      %489 = vmatprep.subr.mxu0 0.0
      %490 = vmatpush1.msra.mxu0 0.0
      %491 = vmatprep.subr.mxu0 0.0
      %492 = vmatpush1.msra.mxu0 0.0
      %493 = vmatprep.subr.mxu0 0.0
      %494 = vmatpush1.msra.mxu0 0.0
      %495 = vmatprep.subr.mxu0 0.0
      %496 = vmatpush1.msra.mxu0 0.0
      %497 = vmatprep.subr.mxu0 0.0
      %498 = vmatpush1.msra.mxu0 0.0
      %499 = vmatprep.subr.mxu0 0.0
      %500 = vmatpush1.msra.mxu0 0.0
      %501 = vmatprep.subr.mxu0 0.0
      %502 = vmatpush1.msra.mxu0 0.0
      %503 = vmatprep.subr.mxu0 0.0
      %504 = vmatpush1.msra.mxu0 0.0
      %505 = vmatprep.subr.mxu0 0.0
      %506 = vmatpush1.msra.mxu0 0.0
      %507 = vmatprep.subr.mxu0 0.0
      %508 = vmatpush1.msra.mxu0 0.0
      %509 = vmatprep.subr.mxu0 0.0
      %510 = vmatpush1.msra.mxu0 0.0
      %511 = vmatprep.subr.mxu0 0.0
      %512 = vmatpush1.msra.mxu0 0.0
      %513 = vmatprep.subr.mxu0 0.0
      %514 = vmatpush1.msra.mxu0 0.0
      %515 = vmatprep.subr.mxu0 0.0
      %516 = vmatpush1.msra.mxu0 0.0
      %517 = vmatprep.subr.mxu0 0.0
      %518 = vmatpush1.msra.mxu0 0.0
      %519 = vmatprep.subr.mxu0 0.0
      %520 = vmatpush1.msra.mxu0 0.0
      %521 = vmatprep.subr.mxu0 0.0
      %522 = vmatpush1.msra.mxu0 0.0
      %523 = vmatprep.subr.mxu0 0.0
      %524 = vmatpush1.msra.mxu0 0.0
      %525 = vmatprep.subr.mxu0 0.0
      %526 = vmatpush1.msra.mxu0 0.0
      %527 = vmatprep.subr.mxu0 0.0
      %528 = vmatpush1.msra.mxu0 0.0
      %529 = vmatprep.mubr.f32.mxu0 0.0
      %530 = vmatmul.mubr.f32.gmra.mrb[0].mxu0 %v270
      %v531 = vpop.f32.mrb[0].mxu0
      %v532 = vadd.f32 0.0, %v531
      %v533 = vpop.f32.mrb[0].mxu0
      %534 = vmatprep.mubr.f32.mxu0 0.0
      %535 = vmatmul.mubr.f32.gmra.mrb[0].mxu0 %v273
      %v536 = vpop.f32.mrb[0].mxu0
      %v537 = vadd.f32 0.0, %v536
      %v538 = vpop.f32.mrb[0].mxu0
      %539 = vmatprep.mubr.f32.mxu0 0.0
      %540 = vmatmul.mubr.f32.gmra.mrb[0].mxu0 %v276
      %v541 = vpop.f32.mrb[0].mxu0
      %v542 = vadd.f32 0.0, %v541
      %v543 = vpop.f32.mrb[0].mxu0
      %544 = vmatprep.mubr.f32.mxu0 0.0
      %545 = vmatmul.mubr.f32.gmra.mrb[0].mxu0 %v279
      %v546 = vpop.f32.mrb[0].mxu0
      %v547 = vadd.f32 0.0, %v546
      %v548 = vpop.f32.mrb[0].mxu0
      %549 = vmatprep.mubr.f32.mxu0 0.0
      %550 = vmatmul.mubr.f32.gmra.mrb[0].mxu0 %v282
      %v551 = vpop.f32.mrb[0].mxu0
      %v552 = vadd.f32 0.0, %v551
      %v553 = vpop.f32.mrb[0].mxu0
      %554 = vmatprep.mubr.f32.mxu0 0.0
      %555 = vmatmul.mubr.f32.gmra.mrb[0].mxu0 %v285
      %v556 = vpop.f32.mrb[0].mxu0
      %v557 = vadd.f32 0.0, %v556
      %v558 = vpop.f32.mrb[0].mxu0
      %559 = vmatprep.mubr.f32.mxu0 0.0
      %560 = vmatmul.mubr.f32.gmra.mrb[0].mxu0 %v288
      %v561 = vpop.f32.mrb[0].mxu0
      %v562 = vadd.f32 0.0, %v561
      %v563 = vpop.f32.mrb[0].mxu0
      %564 = vmatprep.mubr.f32.mxu0 0.0
      %565 = vmatmul.mubr.f32.gmra.mrb[0].mxu0 %v291
      %v566 = vpop.f32.mrb[0].mxu0
      %v567 = vadd.f32 0.0, %v566
      %v568 = vpop.f32.mrb[0].mxu0
      %569 = vmatprep.mubr.f32.mxu0 0.0
      %570 = vmatmul.mubr.f32.gmra.mrb[0].mxu0 %v294
      %v571 = vpop.f32.mrb[0].mxu0
      %v572 = vadd.f32 0.0, %v571
      %v573 = vpop.f32.mrb[0].mxu0
      %574 = vmatprep.mubr.f32.mxu0 0.0
      %575 = vmatmul.mubr.f32.gmra.mrb[0].mxu0 %v297
      %v576 = vpop.f32.mrb[0].mxu0
      %v577 = vadd.f32 0.0, %v576
      %v578 = vpop.f32.mrb[0].mxu0
      %579 = vmatprep.mubr.f32.mxu0 0.0
      %580 = vmatmul.mubr.f32.gmra.mrb[0].mxu0 %v300
      %v581 = vpop.f32.mrb[0].mxu0
      %v582 = vadd.f32 0.0, %v581
      %v583 = vpop.f32.mrb[0].mxu0
      %584 = vmatprep.mubr.f32.mxu0 0.0
      %585 = vmatmul.mubr.f32.gmra.mrb[0].mxu0 %v303
      %v586 = vpop.f32.mrb[0].mxu0
      %v587 = vadd.f32 0.0, %v586
      %v588 = vpop.f32.mrb[0].mxu0
      %589 = vmatprep.mubr.f32.mxu0 0.0
      %590 = vmatmul.mubr.f32.gmra.mrb[0].mxu0 %v306
      %v591 = vpop.f32.mrb[0].mxu0
      %v592 = vadd.f32 0.0, %v591
      %v593 = vpop.f32.mrb[0].mxu0
      %594 = vmatprep.mubr.f32.mxu0 0.0
      %595 = vmatmul.mubr.f32.gmra.mrb[0].mxu0 %v309
      %v596 = vpop.f32.mrb[0].mxu0
      %v597 = vadd.f32 0.0, %v596
      %v598 = vpop.f32.mrb[0].mxu0
      %599 = vmatprep.mubr.f32.mxu0 0.0
      %600 = vmatmul.mubr.f32.gmra.mrb[0].mxu0 %v312
      %v601 = vpop.f32.mrb[0].mxu0
      %v602 = vadd.f32 0.0, %v601
      %v603 = vpop.f32.mrb[0].mxu0
      %604 = vmatprep.mubr.f32.mxu0 0.0
      %605 = vmatmul.mubr.f32.gmra.mrb[0].mxu0 %v315
      %v606 = vpop.f32.mrb[0].mxu0
      %v607 = vadd.f32 0.0, %v606
      %v608 = vpop.f32.mrb[0].mxu0
      %609 = vmatprep.mubr.f32.mxu0 0.0
      %610 = vmatmul.mubr.f32.gmra.mrb[0].mxu0 %v318
      %v611 = vpop.f32.mrb[0].mxu0
      %v612 = vadd.f32 0.0, %v611
      %v613 = vpop.f32.mrb[0].mxu0
      %614 = vmatprep.mubr.f32.mxu0 0.0
      %615 = vmatmul.mubr.f32.gmra.mrb[0].mxu0 %v321
      %v616 = vpop.f32.mrb[0].mxu0
      %v617 = vadd.f32 0.0, %v616
      %v618 = vpop.f32.mrb[0].mxu0
      %619 = vmatprep.mubr.f32.mxu0 0.0
      %620 = vmatmul.mubr.f32.gmra.mrb[0].mxu0 %v324
      %v621 = vpop.f32.mrb[0].mxu0
      %v622 = vadd.f32 0.0, %v621
      %v623 = vpop.f32.mrb[0].mxu0
      %624 = vmatprep.mubr.f32.mxu0 0.0
      %625 = vmatmul.mubr.f32.gmra.mrb[0].mxu0 %v327
      %v626 = vpop.f32.mrb[0].mxu0
      %v627 = vadd.f32 0.0, %v626
      %v628 = vpop.f32.mrb[0].mxu0
      %629 = vmatprep.mubr.f32.mxu0 0.0
      %630 = vmatmul.mubr.f32.gmra.mrb[0].mxu0 %v330
      %v631 = vpop.f32.mrb[0].mxu0
      %v632 = vadd.f32 0.0, %v631
      %v633 = vpop.f32.mrb[0].mxu0
      %634 = vmatprep.mubr.f32.mxu0 0.0
      %635 = vmatmul.mubr.f32.gmra.mrb[0].mxu0 %v333
      %v636 = vpop.f32.mrb[0].mxu0
      %v637 = vadd.f32 0.0, %v636
      %v638 = vpop.f32.mrb[0].mxu0
      %639 = vmatprep.mubr.f32.mxu0 0.0
      %640 = vmatmul.mubr.f32.gmra.mrb[0].mxu0 %v336
      %v641 = vpop.f32.mrb[0].mxu0
      %v642 = vadd.f32 0.0, %v641
      %v643 = vpop.f32.mrb[0].mxu0
      %644 = vmatprep.mubr.f32.mxu0 0.0
      %645 = vmatmul.mubr.f32.gmra.mrb[0].mxu0 %v339
      %v646 = vpop.f32.mrb[0].mxu0
      %v647 = vadd.f32 0.0, %v646
      %v648 = vpop.f32.mrb[0].mxu0
      %649 = vmatprep.mubr.f32.mxu0 0.0
      %650 = vmatmul.mubr.f32.gmra.mrb[0].mxu0 %v342
      %v651 = vpop.f32.mrb[0].mxu0
      %v652 = vadd.f32 0.0, %v651
      %v653 = vpop.f32.mrb[0].mxu0
      %654 = vmatprep.mubr.f32.mxu0 0.0
      %655 = vmatmul.mubr.f32.gmra.mrb[0].mxu0 %v345
      %v656 = vpop.f32.mrb[0].mxu0
      %v657 = vadd.f32 0.0, %v656
      %v658 = vpop.f32.mrb[0].mxu0
      %659 = vmatprep.mubr.f32.mxu0 0.0
      %660 = vmatmul.mubr.f32.gmra.mrb[0].mxu0 %v348
      %v661 = vpop.f32.mrb[0].mxu0
      %v662 = vadd.f32 0.0, %v661
      %v663 = vpop.f32.mrb[0].mxu0
      %664 = vmatprep.mubr.f32.mxu0 0.0
      %665 = vmatmul.mubr.f32.gmra.mrb[0].mxu0 %v351
      %v666 = vpop.f32.mrb[0].mxu0
      %v667 = vadd.f32 0.0, %v666
      %v668 = vpop.f32.mrb[0].mxu0
      %669 = vmatprep.mubr.f32.mxu0 0.0
      %670 = vmatmul.mubr.f32.gmra.mrb[0].mxu0 %v354
      %v671 = vpop.f32.mrb[0].mxu0
      %v672 = vadd.f32 0.0, %v671
      %v673 = vpop.f32.mrb[0].mxu0
      %674 = vmatprep.mubr.f32.mxu0 0.0
      %675 = vmatmul.mubr.f32.gmra.mrb[0].mxu0 %v357
      %v676 = vpop.f32.mrb[0].mxu0
      %v677 = vadd.f32 0.0, %v676
      %v678 = vpop.f32.mrb[0].mxu0
      %679 = vmatprep.mubr.f32.mxu0 0.0
      %680 = vmatmul.mubr.f32.gmra.mrb[0].mxu0 %v360
      %v681 = vpop.f32.mrb[0].mxu0
      %v682 = vadd.f32 0.0, %v681
      %v683 = vpop.f32.mrb[0].mxu0
      %684 = vmatprep.mubr.f32.mxu0 0.0
      %685 = vmatmul.mubr.f32.gmra.mrb[0].mxu0 %v363
      %v686 = vpop.f32.mrb[0].mxu0
      %v687 = vadd.f32 0.0, %v686
      %v688 = vpop.f32.mrb[0].mxu0
      %689 = vmatprep.mubr.f32.mxu0 0.0
      %690 = vmatmul.mubr.f32.gmra.mrb[0].mxu0 %v366
      %v691 = vpop.f32.mrb[0].mxu0
      %v692 = vadd.f32 0.0, %v691
      %v693 = vpop.f32.mrb[0].mxu0
      %694 = vmatprep.mubr.f32.mxu0 0.0
      %695 = vmatmul.mubr.f32.gmra.mrb[0].mxu0 %v369
      %v696 = vpop.f32.mrb[0].mxu0
      %v697 = vadd.f32 0.0, %v696
      %v698 = vpop.f32.mrb[0].mxu0
      %699 = vmatprep.mubr.f32.mxu0 0.0
      %700 = vmatmul.mubr.f32.gmra.mrb[0].mxu0 %v372
      %v701 = vpop.f32.mrb[0].mxu0
      %v702 = vadd.f32 0.0, %v701
      %v703 = vpop.f32.mrb[0].mxu0
      %704 = vmatprep.mubr.f32.mxu0 0.0
      %705 = vmatmul.mubr.f32.gmra.mrb[0].mxu0 %v375
      %v706 = vpop.f32.mrb[0].mxu0
      %v707 = vadd.f32 0.0, %v706
      %v708 = vpop.f32.mrb[0].mxu0
      %709 = vmatprep.mubr.f32.mxu0 0.0
      %710 = vmatmul.mubr.f32.gmra.mrb[0].mxu0 %v378
      %v711 = vpop.f32.mrb[0].mxu0
      %v712 = vadd.f32 0.0, %v711
      %v713 = vpop.f32.mrb[0].mxu0
      %714 = vmatprep.mubr.f32.mxu0 0.0
      %715 = vmatmul.mubr.f32.gmra.mrb[0].mxu0 %v381
      %v716 = vpop.f32.mrb[0].mxu0
      %v717 = vadd.f32 0.0, %v716
      %v718 = vpop.f32.mrb[0].mxu0
      %719 = vmatprep.mubr.f32.mxu0 0.0
      %720 = vmatmul.mubr.f32.gmra.mrb[0].mxu0 %v384
      %v721 = vpop.f32.mrb[0].mxu0
      %v722 = vadd.f32 0.0, %v721
      %v723 = vpop.f32.mrb[0].mxu0
      %724 = vmatprep.mubr.f32.mxu0 0.0
      %725 = vmatmul.mubr.f32.gmra.mrb[0].mxu0 %v387
      %v726 = vpop.f32.mrb[0].mxu0
      %v727 = vadd.f32 0.0, %v726
      %v728 = vpop.f32.mrb[0].mxu0
      %729 = vmatprep.mubr.f32.mxu0 0.0
      %730 = vmatmul.mubr.f32.gmra.mrb[0].mxu0 %v390
      %v731 = vpop.f32.mrb[0].mxu0
      %v732 = vadd.f32 0.0, %v731
      %v733 = vpop.f32.mrb[0].mxu0
      %734 = vmatprep.mubr.f32.mxu0 0.0
      %735 = vmatmul.mubr.f32.gmra.mrb[0].mxu0 %v393
      %v736 = vpop.f32.mrb[0].mxu0
      %v737 = vadd.f32 0.0, %v736
      %v738 = vpop.f32.mrb[0].mxu0
      %739 = vmatprep.mubr.f32.mxu0 0.0
      %740 = vmatmul.mubr.f32.gmra.mrb[0].mxu0 %v396
      %v741 = vpop.f32.mrb[0].mxu0
      %v742 = vadd.f32 0.0, %v741
      %v743 = vpop.f32.mrb[0].mxu0
      %744 = vmatprep.mubr.f32.mxu0 0.0
      %745 = vmatmul.mubr.f32.gmra.mrb[0].mxu0 %v399
      %v746 = vpop.f32.mrb[0].mxu0
      %v747 = vadd.f32 0.0, %v746
      %v748 = vpop.f32.mrb[0].mxu0
      %749 = vmatprep.mubr.f32.mxu0 0.0
      %750 = vmatmul.mubr.f32.gmra.mrb[0].mxu0 %v402
      %v751 = vpop.f32.mrb[0].mxu0
      %v752 = vadd.f32 0.0, %v751
      %v753 = vpop.f32.mrb[0].mxu0
      %754 = vmatprep.mubr.f32.mxu0 0.0
      %755 = vmatmul.mubr.f32.gmra.mrb[0].mxu0 %v405
      %v756 = vpop.f32.mrb[0].mxu0
      %v757 = vadd.f32 0.0, %v756
      %v758 = vpop.f32.mrb[0].mxu0
      %759 = vmatprep.mubr.f32.mxu0 0.0
      %760 = vmatmul.mubr.f32.gmra.mrb[0].mxu0 %v408
      %v761 = vpop.f32.mrb[0].mxu0
      %v762 = vadd.f32 0.0, %v761
      %v763 = vpop.f32.mrb[0].mxu0
      %764 = vmatprep.mubr.f32.mxu0 0.0
      %765 = vmatmul.mubr.f32.gmra.mrb[0].mxu0 %v411
      %v766 = vpop.f32.mrb[0].mxu0
      %v767 = vadd.f32 0.0, %v766
      %v768 = vpop.f32.mrb[0].mxu0
      %769 = vmatprep.mubr.f32.mxu0 0.0
      %770 = vmatmul.mubr.f32.gmra.mrb[0].mxu0 %v414
      %v771 = vpop.f32.mrb[0].mxu0
      %v772 = vadd.f32 0.0, %v771
      %v773 = vpop.f32.mrb[0].mxu0
      %774 = vmatprep.mubr.f32.mxu0 0.0
      %775 = vmatmul.mubr.f32.gmra.mrb[0].mxu0 %v417
      %v776 = vpop.f32.mrb[0].mxu0
      %v777 = vadd.f32 0.0, %v776
      %v778 = vpop.f32.mrb[0].mxu0
      %779 = vmatprep.mubr.f32.mxu0 0.0
      %780 = vmatmul.mubr.f32.gmra.mrb[0].mxu0 %v420
      %v781 = vpop.f32.mrb[0].mxu0
      %v782 = vadd.f32 0.0, %v781
      %v783 = vpop.f32.mrb[0].mxu0
      %784 = vmatprep.mubr.f32.mxu0 0.0
      %785 = vmatmul.mubr.f32.gmra.mrb[0].mxu0 %v423
      %v786 = vpop.f32.mrb[0].mxu0
      %v787 = vadd.f32 0.0, %v786
      %v788 = vpop.f32.mrb[0].mxu0
      %789 = vmatprep.mubr.f32.mxu0 0.0
      %790 = vmatmul.mubr.f32.gmra.mrb[0].mxu0 %v426
      %v791 = vpop.f32.mrb[0].mxu0
      %v792 = vadd.f32 0.0, %v791
      %v793 = vpop.f32.mrb[0].mxu0
      %794 = vmatprep.mubr.f32.mxu0 0.0
      %795 = vmatmul.mubr.f32.gmra.mrb[0].mxu0 %v429
      %v796 = vpop.f32.mrb[0].mxu0
      %v797 = vadd.f32 0.0, %v796
      %v798 = vpop.f32.mrb[0].mxu0
      %799 = vmatprep.mubr.f32.mxu0 0.0
      %800 = vmatmul.mubr.f32.gmra.mrb[0].mxu0 %v432
      %v801 = vpop.f32.mrb[0].mxu0
      %v802 = vadd.f32 0.0, %v801
      %v803 = vpop.f32.mrb[0].mxu0
      %804 = vmatprep.mubr.f32.mxu0 0.0
      %805 = vmatmul.mubr.f32.gmra.mrb[0].mxu0 %v435
      %v806 = vpop.f32.mrb[0].mxu0
      %v807 = vadd.f32 0.0, %v806
      %v808 = vpop.f32.mrb[0].mxu0
      %809 = vmatprep.mubr.f32.mxu0 0.0
      %810 = vmatmul.mubr.f32.gmra.mrb[0].mxu0 %v438
      %v811 = vpop.f32.mrb[0].mxu0
      %v812 = vadd.f32 0.0, %v811
      %v813 = vpop.f32.mrb[0].mxu0
      %814 = vmatprep.mubr.f32.mxu0 0.0
      %815 = vmatmul.mubr.f32.gmra.mrb[0].mxu0 %v441
      %v816 = vpop.f32.mrb[0].mxu0
      %v817 = vadd.f32 0.0, %v816
      %v818 = vpop.f32.mrb[0].mxu0
      %819 = vmatprep.mubr.f32.mxu0 0.0
      %820 = vmatmul.mubr.f32.gmra.mrb[0].mxu0 %v444
      %v821 = vpop.f32.mrb[0].mxu0
      %v822 = vadd.f32 0.0, %v821
      %v823 = vpop.f32.mrb[0].mxu0
      %824 = vmatprep.mubr.f32.mxu0 0.0
      %825 = vmatmul.mubr.f32.gmra.mrb[0].mxu0 %v447
      %v826 = vpop.f32.mrb[0].mxu0
      %v827 = vadd.f32 0.0, %v826
      %v828 = vpop.f32.mrb[0].mxu0
      %829 = vmatprep.mubr.f32.mxu0 0.0
      %830 = vmatmul.mubr.f32.gmra.mrb[0].mxu0 %v450
      %v831 = vpop.f32.mrb[0].mxu0
      %v832 = vadd.f32 0.0, %v831
      %v833 = vpop.f32.mrb[0].mxu0
      %834 = vmatprep.mubr.f32.mxu0 0.0
      %835 = vmatmul.mubr.f32.gmra.mrb[0].mxu0 %v453
      %v836 = vpop.f32.mrb[0].mxu0
      %v837 = vadd.f32 0.0, %v836
      %v838 = vpop.f32.mrb[0].mxu0
      %839 = vmatprep.mubr.f32.mxu0 0.0
      %840 = vmatmul.mubr.f32.gmra.mrb[0].mxu0 %v456
      %v841 = vpop.f32.mrb[0].mxu0
      %v842 = vadd.f32 0.0, %v841
      %v843 = vpop.f32.mrb[0].mxu0
      %844 = vmatprep.mubr.f32.mxu0 0.0
      %845 = vmatmul.mubr.f32.gmra.mrb[0].mxu0 %v459
      %v846 = vpop.f32.mrb[0].mxu0
      %v847 = vadd.f32 0.0, %v846
      %v848 = vpop.f32.mrb[0].mxu0
      %849 = vdwg.mxu0
      %v850 = vmax.f32 %v532, 0.0
      %v851 = vmax.f32 %v537, 0.0
      %v852 = vmax.f32 %v542, 0.0
      %v853 = vmax.f32 %v547, 0.0
      %v854 = vmax.f32 %v552, 0.0
      %v855 = vmax.f32 %v557, 0.0
      %v856 = vmax.f32 %v562, 0.0
      %v857 = vmax.f32 %v567, 0.0
      %v858 = vmax.f32 %v572, 0.0
      %v859 = vmax.f32 %v577, 0.0
      %v860 = vmax.f32 %v582, 0.0
      %v861 = vmax.f32 %v587, 0.0
      %v862 = vmax.f32 %v592, 0.0
      %v863 = vmax.f32 %v597, 0.0
      %v864 = vmax.f32 %v602, 0.0
      %v865 = vmax.f32 %v607, 0.0
      %v866 = vmax.f32 %v612, 0.0
      %v867 = vmax.f32 %v617, 0.0
      %v868 = vmax.f32 %v622, 0.0
      %v869 = vmax.f32 %v627, 0.0
      %v870 = vmax.f32 %v632, 0.0
      %v871 = vmax.f32 %v637, 0.0
      %v872 = vmax.f32 %v642, 0.0
      %v873 = vmax.f32 %v647, 0.0
      %v874 = vmax.f32 %v652, 0.0
      %v875 = vmax.f32 %v657, 0.0
      %v876 = vmax.f32 %v662, 0.0
      %v877 = vmax.f32 %v667, 0.0
      %v878 = vmax.f32 %v672, 0.0
      %v879 = vmax.f32 %v677, 0.0
      %v880 = vmax.f32 %v682, 0.0
      %v881 = vmax.f32 %v687, 0.0
      %v882 = vmax.f32 %v692, 0.0
      %v883 = vmax.f32 %v697, 0.0
      %v884 = vmax.f32 %v702, 0.0
      %v885 = vmax.f32 %v707, 0.0
      %v886 = vmax.f32 %v712, 0.0
      %v887 = vmax.f32 %v717, 0.0
      %v888 = vmax.f32 %v722, 0.0
      %v889 = vmax.f32 %v727, 0.0
      %v890 = vmax.f32 %v732, 0.0
      %v891 = vmax.f32 %v737, 0.0
      %v892 = vmax.f32 %v742, 0.0
      %v893 = vmax.f32 %v747, 0.0
      %v894 = vmax.f32 %v752, 0.0
      %v895 = vmax.f32 %v757, 0.0
      %v896 = vmax.f32 %v762, 0.0
      %v897 = vmax.f32 %v767, 0.0
      %v898 = vmax.f32 %v772, 0.0
      %v899 = vmax.f32 %v777, 0.0
      %v900 = vmax.f32 %v782, 0.0
      %v901 = vmax.f32 %v787, 0.0
      %v902 = vmax.f32 %v792, 0.0
      %v903 = vmax.f32 %v797, 0.0
      %v904 = vmax.f32 %v802, 0.0
      %v905 = vmax.f32 %v807, 0.0
      %v906 = vmax.f32 %v812, 0.0
      %v907 = vmax.f32 %v817, 0.0
      %v908 = vmax.f32 %v822, 0.0
      %v909 = vmax.f32 %v827, 0.0
      %v910 = vmax.f32 %v832, 0.0
      %v911 = vmax.f32 %v837, 0.0
      %v912 = vmax.f32 %v842, 0.0
      %v913 = vmax.f32 %v847, 0.0
      %v914 = vld [vmem:[%s2] sm:$0xff]
      %v915 = vld [vmem:[%s2 + $0x8] sm:$0xff]
      %v916 = vld [vmem:[%s2 + $0x10] sm:$0xff]
      %v917 = vld [vmem:[%s2 + $0x18] sm:$0xff]
      %v918 = vld [vmem:[%s2 + $0x20] sm:$0xff]
      %v919 = vld [vmem:[%s2 + $0x28] sm:$0xff]
      %v920 = vld [vmem:[%s2 + $0x30] sm:$0xff]
      %v921 = vld [vmem:[%s2 + $0x38] sm:$0xff]
      %v922 = vld [vmem:[%s2 + $0x40] sm:$0xff]
      %v923 = vld [vmem:[%s2 + $0x48] sm:$0xff]
      %v924 = vld [vmem:[%s2 + $0x50] sm:$0xff]
      %v925 = vld [vmem:[%s2 + $0x58] sm:$0xff]
      %v926 = vld [vmem:[%s2 + $0x60] sm:$0xff]
      %v927 = vld [vmem:[%s2 + $0x68] sm:$0xff]
      %v928 = vld [vmem:[%s2 + $0x70] sm:$0xff]
      %v929 = vld [vmem:[%s2 + $0x78] sm:$0xff]
      %930 = vmatprep.subr.mxu0 0.0
      %931 = vmatpush1.msra.mxu0 %v914
      %932 = vmatprep.subr.mxu0 0.0
      %933 = vmatpush1.msra.mxu0 %v915
      %934 = vmatprep.subr.mxu0 0.0
      %935 = vmatpush1.msra.mxu0 %v916
      %936 = vmatprep.subr.mxu0 0.0
      %937 = vmatpush1.msra.mxu0 %v917
      %938 = vmatprep.subr.mxu0 0.0
      %939 = vmatpush1.msra.mxu0 %v918
      %940 = vmatprep.subr.mxu0 0.0
      %941 = vmatpush1.msra.mxu0 %v919
      %942 = vmatprep.subr.mxu0 0.0
      %943 = vmatpush1.msra.mxu0 %v920
      %944 = vmatprep.subr.mxu0 0.0
      %945 = vmatpush1.msra.mxu0 %v921
      %946 = vmatprep.subr.mxu0 0.0
      %947 = vmatpush1.msra.mxu0 %v922
      %948 = vmatprep.subr.mxu0 0.0
      %949 = vmatpush1.msra.mxu0 %v923
      %950 = vmatprep.subr.mxu0 0.0
      %951 = vmatpush1.msra.mxu0 %v924
      %952 = vmatprep.subr.mxu0 0.0
      %953 = vmatpush1.msra.mxu0 %v925
      %954 = vmatprep.subr.mxu0 0.0
      %955 = vmatpush1.msra.mxu0 %v926
      %956 = vmatprep.subr.mxu0 0.0
      %957 = vmatpush1.msra.mxu0 %v927
      %958 = vmatprep.subr.mxu0 0.0
      %959 = vmatpush1.msra.mxu0 %v928
      %960 = vmatprep.subr.mxu0 0.0
      %961 = vmatpush1.msra.mxu0 %v929
      %962 = vmatprep.subr.mxu0 0.0
      %963 = vmatpush1.msra.mxu0 0.0
      %964 = vmatprep.subr.mxu0 0.0
      %965 = vmatpush1.msra.mxu0 0.0
      %966 = vmatprep.subr.mxu0 0.0
      %967 = vmatpush1.msra.mxu0 0.0
      %968 = vmatprep.subr.mxu0 0.0
      %969 = vmatpush1.msra.mxu0 0.0
      %970 = vmatprep.subr.mxu0 0.0
      %971 = vmatpush1.msra.mxu0 0.0
      %972 = vmatprep.subr.mxu0 0.0
      %973 = vmatpush1.msra.mxu0 0.0
      %974 = vmatprep.subr.mxu0 0.0
      %975 = vmatpush1.msra.mxu0 0.0
      %976 = vmatprep.subr.mxu0 0.0
      %977 = vmatpush1.msra.mxu0 0.0
      %978 = vmatprep.subr.mxu0 0.0
      %979 = vmatpush1.msra.mxu0 0.0
      %980 = vmatprep.subr.mxu0 0.0
      %981 = vmatpush1.msra.mxu0 0.0
      %982 = vmatprep.subr.mxu0 0.0
      %983 = vmatpush1.msra.mxu0 0.0
      %984 = vmatprep.subr.mxu0 0.0
      %985 = vmatpush1.msra.mxu0 0.0
      %986 = vmatprep.subr.mxu0 0.0
      %987 = vmatpush1.msra.mxu0 0.0
      %988 = vmatprep.subr.mxu0 0.0
      %989 = vmatpush1.msra.mxu0 0.0
      %990 = vmatprep.subr.mxu0 0.0
      %991 = vmatpush1.msra.mxu0 0.0
      %992 = vmatprep.subr.mxu0 0.0
      %993 = vmatpush1.msra.mxu0 0.0
      %994 = vmatprep.mubr.f32.mxu0 0.0
      %995 = vmatmul.mubr.f32.gmra.mrb[0].mxu0 %v850
      %v996 = vpop.f32.mrb[0].mxu0
      %v997 = vadd.f32 0.0, %v996
      %v998 = vpop.f32.mrb[0].mxu0
      %999 = vmatprep.mubr.f32.mxu0 0.0
      %1000 = vmatmul.mubr.f32.gmra.mrb[0].mxu0 %v851
      %v1001 = vpop.f32.mrb[0].mxu0
      %v1002 = vadd.f32 0.0, %v1001
      %v1003 = vpop.f32.mrb[0].mxu0
      %1004 = vmatprep.mubr.f32.mxu0 0.0
      %1005 = vmatmul.mubr.f32.gmra.mrb[0].mxu0 %v852
      %v1006 = vpop.f32.mrb[0].mxu0
      %v1007 = vadd.f32 0.0, %v1006
      %v1008 = vpop.f32.mrb[0].mxu0
      %1009 = vmatprep.mubr.f32.mxu0 0.0
      %1010 = vmatmul.mubr.f32.gmra.mrb[0].mxu0 %v853
      %v1011 = vpop.f32.mrb[0].mxu0
      %v1012 = vadd.f32 0.0, %v1011
      %v1013 = vpop.f32.mrb[0].mxu0
      %1014 = vmatprep.mubr.f32.mxu0 0.0
      %1015 = vmatmul.mubr.f32.gmra.mrb[0].mxu0 %v854
      %v1016 = vpop.f32.mrb[0].mxu0
      %v1017 = vadd.f32 0.0, %v1016
      %v1018 = vpop.f32.mrb[0].mxu0
      %1019 = vmatprep.mubr.f32.mxu0 0.0
      %1020 = vmatmul.mubr.f32.gmra.mrb[0].mxu0 %v855
      %v1021 = vpop.f32.mrb[0].mxu0
      %v1022 = vadd.f32 0.0, %v1021
      %v1023 = vpop.f32.mrb[0].mxu0
      %1024 = vmatprep.mubr.f32.mxu0 0.0
      %1025 = vmatmul.mubr.f32.gmra.mrb[0].mxu0 %v856
      %v1026 = vpop.f32.mrb[0].mxu0
      %v1027 = vadd.f32 0.0, %v1026
      %v1028 = vpop.f32.mrb[0].mxu0
      %1029 = vmatprep.mubr.f32.mxu0 0.0
      %1030 = vmatmul.mubr.f32.gmra.mrb[0].mxu0 %v857
      %v1031 = vpop.f32.mrb[0].mxu0
      %v1032 = vadd.f32 0.0, %v1031
      %v1033 = vpop.f32.mrb[0].mxu0
      %1034 = vmatprep.mubr.f32.mxu0 0.0
      %1035 = vmatmul.mubr.f32.gmra.mrb[0].mxu0 %v858
      %v1036 = vpop.f32.mrb[0].mxu0
      %v1037 = vadd.f32 0.0, %v1036
      %v1038 = vpop.f32.mrb[0].mxu0
      %1039 = vmatprep.mubr.f32.mxu0 0.0
      %1040 = vmatmul.mubr.f32.gmra.mrb[0].mxu0 %v859
      %v1041 = vpop.f32.mrb[0].mxu0
      %v1042 = vadd.f32 0.0, %v1041
      %v1043 = vpop.f32.mrb[0].mxu0
      %1044 = vmatprep.mubr.f32.mxu0 0.0
      %1045 = vmatmul.mubr.f32.gmra.mrb[0].mxu0 %v860
      %v1046 = vpop.f32.mrb[0].mxu0
      %v1047 = vadd.f32 0.0, %v1046
      %v1048 = vpop.f32.mrb[0].mxu0
      %1049 = vmatprep.mubr.f32.mxu0 0.0
      %1050 = vmatmul.mubr.f32.gmra.mrb[0].mxu0 %v861
      %v1051 = vpop.f32.mrb[0].mxu0
      %v1052 = vadd.f32 0.0, %v1051
      %v1053 = vpop.f32.mrb[0].mxu0
      %1054 = vmatprep.mubr.f32.mxu0 0.0
      %1055 = vmatmul.mubr.f32.gmra.mrb[0].mxu0 %v862
      %v1056 = vpop.f32.mrb[0].mxu0
      %v1057 = vadd.f32 0.0, %v1056
      %v1058 = vpop.f32.mrb[0].mxu0
      %1059 = vmatprep.mubr.f32.mxu0 0.0
      %1060 = vmatmul.mubr.f32.gmra.mrb[0].mxu0 %v863
      %v1061 = vpop.f32.mrb[0].mxu0
      %v1062 = vadd.f32 0.0, %v1061
      %v1063 = vpop.f32.mrb[0].mxu0
      %1064 = vmatprep.mubr.f32.mxu0 0.0
      %1065 = vmatmul.mubr.f32.gmra.mrb[0].mxu0 %v864
      %v1066 = vpop.f32.mrb[0].mxu0
      %v1067 = vadd.f32 0.0, %v1066
      %v1068 = vpop.f32.mrb[0].mxu0
      %1069 = vmatprep.mubr.f32.mxu0 0.0
      %1070 = vmatmul.mubr.f32.gmra.mrb[0].mxu0 %v865
      %v1071 = vpop.f32.mrb[0].mxu0
      %v1072 = vadd.f32 0.0, %v1071
      %v1073 = vpop.f32.mrb[0].mxu0
      %1074 = vmatprep.mubr.f32.mxu0 0.0
      %1075 = vmatmul.mubr.f32.gmra.mrb[0].mxu0 %v866
      %v1076 = vpop.f32.mrb[0].mxu0
      %v1077 = vadd.f32 0.0, %v1076
      %v1078 = vpop.f32.mrb[0].mxu0
      %1079 = vmatprep.mubr.f32.mxu0 0.0
      %1080 = vmatmul.mubr.f32.gmra.mrb[0].mxu0 %v867
      %v1081 = vpop.f32.mrb[0].mxu0
      %v1082 = vadd.f32 0.0, %v1081
      %v1083 = vpop.f32.mrb[0].mxu0
      %1084 = vmatprep.mubr.f32.mxu0 0.0
      %1085 = vmatmul.mubr.f32.gmra.mrb[0].mxu0 %v868
      %v1086 = vpop.f32.mrb[0].mxu0
      %v1087 = vadd.f32 0.0, %v1086
      %v1088 = vpop.f32.mrb[0].mxu0
      %1089 = vmatprep.mubr.f32.mxu0 0.0
      %1090 = vmatmul.mubr.f32.gmra.mrb[0].mxu0 %v869
      %v1091 = vpop.f32.mrb[0].mxu0
      %v1092 = vadd.f32 0.0, %v1091
      %v1093 = vpop.f32.mrb[0].mxu0
      %1094 = vmatprep.mubr.f32.mxu0 0.0
      %1095 = vmatmul.mubr.f32.gmra.mrb[0].mxu0 %v870
      %v1096 = vpop.f32.mrb[0].mxu0
      %v1097 = vadd.f32 0.0, %v1096
      %v1098 = vpop.f32.mrb[0].mxu0
      %1099 = vmatprep.mubr.f32.mxu0 0.0
      %1100 = vmatmul.mubr.f32.gmra.mrb[0].mxu0 %v871
      %v1101 = vpop.f32.mrb[0].mxu0
      %v1102 = vadd.f32 0.0, %v1101
      %v1103 = vpop.f32.mrb[0].mxu0
      %1104 = vmatprep.mubr.f32.mxu0 0.0
      %1105 = vmatmul.mubr.f32.gmra.mrb[0].mxu0 %v872
      %v1106 = vpop.f32.mrb[0].mxu0
      %v1107 = vadd.f32 0.0, %v1106
      %v1108 = vpop.f32.mrb[0].mxu0
      %1109 = vmatprep.mubr.f32.mxu0 0.0
      %1110 = vmatmul.mubr.f32.gmra.mrb[0].mxu0 %v873
      %v1111 = vpop.f32.mrb[0].mxu0
      %v1112 = vadd.f32 0.0, %v1111
      %v1113 = vpop.f32.mrb[0].mxu0
      %1114 = vmatprep.mubr.f32.mxu0 0.0
      %1115 = vmatmul.mubr.f32.gmra.mrb[0].mxu0 %v874
      %v1116 = vpop.f32.mrb[0].mxu0
      %v1117 = vadd.f32 0.0, %v1116
      %v1118 = vpop.f32.mrb[0].mxu0
      %1119 = vmatprep.mubr.f32.mxu0 0.0
      %1120 = vmatmul.mubr.f32.gmra.mrb[0].mxu0 %v875
      %v1121 = vpop.f32.mrb[0].mxu0
      %v1122 = vadd.f32 0.0, %v1121
      %v1123 = vpop.f32.mrb[0].mxu0
      %1124 = vmatprep.mubr.f32.mxu0 0.0
      %1125 = vmatmul.mubr.f32.gmra.mrb[0].mxu0 %v876
      %v1126 = vpop.f32.mrb[0].mxu0
      %v1127 = vadd.f32 0.0, %v1126
      %v1128 = vpop.f32.mrb[0].mxu0
      %1129 = vmatprep.mubr.f32.mxu0 0.0
      %1130 = vmatmul.mubr.f32.gmra.mrb[0].mxu0 %v877
      %v1131 = vpop.f32.mrb[0].mxu0
      %v1132 = vadd.f32 0.0, %v1131
      %v1133 = vpop.f32.mrb[0].mxu0
      %1134 = vmatprep.mubr.f32.mxu0 0.0
      %1135 = vmatmul.mubr.f32.gmra.mrb[0].mxu0 %v878
      %v1136 = vpop.f32.mrb[0].mxu0
      %v1137 = vadd.f32 0.0, %v1136
      %v1138 = vpop.f32.mrb[0].mxu0
      %1139 = vmatprep.mubr.f32.mxu0 0.0
      %1140 = vmatmul.mubr.f32.gmra.mrb[0].mxu0 %v879
      %v1141 = vpop.f32.mrb[0].mxu0
      %v1142 = vadd.f32 0.0, %v1141
      %v1143 = vpop.f32.mrb[0].mxu0
      %1144 = vmatprep.mubr.f32.mxu0 0.0
      %1145 = vmatmul.mubr.f32.gmra.mrb[0].mxu0 %v880
      %v1146 = vpop.f32.mrb[0].mxu0
      %v1147 = vadd.f32 0.0, %v1146
      %v1148 = vpop.f32.mrb[0].mxu0
      %1149 = vmatprep.mubr.f32.mxu0 0.0
      %1150 = vmatmul.mubr.f32.gmra.mrb[0].mxu0 %v881
      %v1151 = vpop.f32.mrb[0].mxu0
      %v1152 = vadd.f32 0.0, %v1151
      %v1153 = vpop.f32.mrb[0].mxu0
      %1154 = vmatprep.mubr.f32.mxu0 0.0
      %1155 = vmatmul.mubr.f32.gmra.mrb[0].mxu0 %v882
      %v1156 = vpop.f32.mrb[0].mxu0
      %v1157 = vadd.f32 0.0, %v1156
      %v1158 = vpop.f32.mrb[0].mxu0
      %1159 = vmatprep.mubr.f32.mxu0 0.0
      %1160 = vmatmul.mubr.f32.gmra.mrb[0].mxu0 %v883
      %v1161 = vpop.f32.mrb[0].mxu0
      %v1162 = vadd.f32 0.0, %v1161
      %v1163 = vpop.f32.mrb[0].mxu0
      %1164 = vmatprep.mubr.f32.mxu0 0.0
      %1165 = vmatmul.mubr.f32.gmra.mrb[0].mxu0 %v884
      %v1166 = vpop.f32.mrb[0].mxu0
      %v1167 = vadd.f32 0.0, %v1166
      %v1168 = vpop.f32.mrb[0].mxu0
      %1169 = vmatprep.mubr.f32.mxu0 0.0
      %1170 = vmatmul.mubr.f32.gmra.mrb[0].mxu0 %v885
      %v1171 = vpop.f32.mrb[0].mxu0
      %v1172 = vadd.f32 0.0, %v1171
      %v1173 = vpop.f32.mrb[0].mxu0
      %1174 = vmatprep.mubr.f32.mxu0 0.0
      %1175 = vmatmul.mubr.f32.gmra.mrb[0].mxu0 %v886
      %v1176 = vpop.f32.mrb[0].mxu0
      %v1177 = vadd.f32 0.0, %v1176
      %v1178 = vpop.f32.mrb[0].mxu0
      %1179 = vmatprep.mubr.f32.mxu0 0.0
      %1180 = vmatmul.mubr.f32.gmra.mrb[0].mxu0 %v887
      %v1181 = vpop.f32.mrb[0].mxu0
      %v1182 = vadd.f32 0.0, %v1181
      %v1183 = vpop.f32.mrb[0].mxu0
      %1184 = vmatprep.mubr.f32.mxu0 0.0
      %1185 = vmatmul.mubr.f32.gmra.mrb[0].mxu0 %v888
      %v1186 = vpop.f32.mrb[0].mxu0
      %v1187 = vadd.f32 0.0, %v1186
      %v1188 = vpop.f32.mrb[0].mxu0
      %1189 = vmatprep.mubr.f32.mxu0 0.0
      %1190 = vmatmul.mubr.f32.gmra.mrb[0].mxu0 %v889
      %v1191 = vpop.f32.mrb[0].mxu0
      %v1192 = vadd.f32 0.0, %v1191
      %v1193 = vpop.f32.mrb[0].mxu0
      %1194 = vmatprep.mubr.f32.mxu0 0.0
      %1195 = vmatmul.mubr.f32.gmra.mrb[0].mxu0 %v890
      %v1196 = vpop.f32.mrb[0].mxu0
      %v1197 = vadd.f32 0.0, %v1196
      %v1198 = vpop.f32.mrb[0].mxu0
      %1199 = vmatprep.mubr.f32.mxu0 0.0
      %1200 = vmatmul.mubr.f32.gmra.mrb[0].mxu0 %v891
      %v1201 = vpop.f32.mrb[0].mxu0
      %v1202 = vadd.f32 0.0, %v1201
      %v1203 = vpop.f32.mrb[0].mxu0
      %1204 = vmatprep.mubr.f32.mxu0 0.0
      %1205 = vmatmul.mubr.f32.gmra.mrb[0].mxu0 %v892
      %v1206 = vpop.f32.mrb[0].mxu0
      %v1207 = vadd.f32 0.0, %v1206
      %v1208 = vpop.f32.mrb[0].mxu0
      %1209 = vmatprep.mubr.f32.mxu0 0.0
      %1210 = vmatmul.mubr.f32.gmra.mrb[0].mxu0 %v893
      %v1211 = vpop.f32.mrb[0].mxu0
      %v1212 = vadd.f32 0.0, %v1211
      %v1213 = vpop.f32.mrb[0].mxu0
      %1214 = vmatprep.mubr.f32.mxu0 0.0
      %1215 = vmatmul.mubr.f32.gmra.mrb[0].mxu0 %v894
      %v1216 = vpop.f32.mrb[0].mxu0
      %v1217 = vadd.f32 0.0, %v1216
      %v1218 = vpop.f32.mrb[0].mxu0
      %1219 = vmatprep.mubr.f32.mxu0 0.0
      %1220 = vmatmul.mubr.f32.gmra.mrb[0].mxu0 %v895
      %v1221 = vpop.f32.mrb[0].mxu0
      %v1222 = vadd.f32 0.0, %v1221
      %v1223 = vpop.f32.mrb[0].mxu0
      %1224 = vmatprep.mubr.f32.mxu0 0.0
      %1225 = vmatmul.mubr.f32.gmra.mrb[0].mxu0 %v896
      %v1226 = vpop.f32.mrb[0].mxu0
      %v1227 = vadd.f32 0.0, %v1226
      %v1228 = vpop.f32.mrb[0].mxu0
      %1229 = vmatprep.mubr.f32.mxu0 0.0
      %1230 = vmatmul.mubr.f32.gmra.mrb[0].mxu0 %v897
      %v1231 = vpop.f32.mrb[0].mxu0
      %v1232 = vadd.f32 0.0, %v1231
      %v1233 = vpop.f32.mrb[0].mxu0
      %1234 = vmatprep.mubr.f32.mxu0 0.0
      %1235 = vmatmul.mubr.f32.gmra.mrb[0].mxu0 %v898
      %v1236 = vpop.f32.mrb[0].mxu0
      %v1237 = vadd.f32 0.0, %v1236
      %v1238 = vpop.f32.mrb[0].mxu0
      %1239 = vmatprep.mubr.f32.mxu0 0.0
      %1240 = vmatmul.mubr.f32.gmra.mrb[0].mxu0 %v899
      %v1241 = vpop.f32.mrb[0].mxu0
      %v1242 = vadd.f32 0.0, %v1241
      %v1243 = vpop.f32.mrb[0].mxu0
      %1244 = vmatprep.mubr.f32.mxu0 0.0
      %1245 = vmatmul.mubr.f32.gmra.mrb[0].mxu0 %v900
      %v1246 = vpop.f32.mrb[0].mxu0
      %v1247 = vadd.f32 0.0, %v1246
      %v1248 = vpop.f32.mrb[0].mxu0
      %1249 = vmatprep.mubr.f32.mxu0 0.0
      %1250 = vmatmul.mubr.f32.gmra.mrb[0].mxu0 %v901
      %v1251 = vpop.f32.mrb[0].mxu0
      %v1252 = vadd.f32 0.0, %v1251
      %v1253 = vpop.f32.mrb[0].mxu0
      %1254 = vmatprep.mubr.f32.mxu0 0.0
      %1255 = vmatmul.mubr.f32.gmra.mrb[0].mxu0 %v902
      %v1256 = vpop.f32.mrb[0].mxu0
      %v1257 = vadd.f32 0.0, %v1256
      %v1258 = vpop.f32.mrb[0].mxu0
      %1259 = vmatprep.mubr.f32.mxu0 0.0
      %1260 = vmatmul.mubr.f32.gmra.mrb[0].mxu0 %v903
      %v1261 = vpop.f32.mrb[0].mxu0
      %v1262 = vadd.f32 0.0, %v1261
      %v1263 = vpop.f32.mrb[0].mxu0
      %1264 = vmatprep.mubr.f32.mxu0 0.0
      %1265 = vmatmul.mubr.f32.gmra.mrb[0].mxu0 %v904
      %v1266 = vpop.f32.mrb[0].mxu0
      %v1267 = vadd.f32 0.0, %v1266
      %v1268 = vpop.f32.mrb[0].mxu0
      %1269 = vmatprep.mubr.f32.mxu0 0.0
      %1270 = vmatmul.mubr.f32.gmra.mrb[0].mxu0 %v905
      %v1271 = vpop.f32.mrb[0].mxu0
      %v1272 = vadd.f32 0.0, %v1271
      %v1273 = vpop.f32.mrb[0].mxu0
      %1274 = vmatprep.mubr.f32.mxu0 0.0
      %1275 = vmatmul.mubr.f32.gmra.mrb[0].mxu0 %v906
      %v1276 = vpop.f32.mrb[0].mxu0
      %v1277 = vadd.f32 0.0, %v1276
      %v1278 = vpop.f32.mrb[0].mxu0
      %1279 = vmatprep.mubr.f32.mxu0 0.0
      %1280 = vmatmul.mubr.f32.gmra.mrb[0].mxu0 %v907
      %v1281 = vpop.f32.mrb[0].mxu0
      %v1282 = vadd.f32 0.0, %v1281
      %v1283 = vpop.f32.mrb[0].mxu0
      %1284 = vmatprep.mubr.f32.mxu0 0.0
      %1285 = vmatmul.mubr.f32.gmra.mrb[0].mxu0 %v908
      %v1286 = vpop.f32.mrb[0].mxu0
      %v1287 = vadd.f32 0.0, %v1286
      %v1288 = vpop.f32.mrb[0].mxu0
      %1289 = vmatprep.mubr.f32.mxu0 0.0
      %1290 = vmatmul.mubr.f32.gmra.mrb[0].mxu0 %v909
      %v1291 = vpop.f32.mrb[0].mxu0
      %v1292 = vadd.f32 0.0, %v1291
      %v1293 = vpop.f32.mrb[0].mxu0
      %1294 = vmatprep.mubr.f32.mxu0 0.0
      %1295 = vmatmul.mubr.f32.gmra.mrb[0].mxu0 %v910
      %v1296 = vpop.f32.mrb[0].mxu0
      %v1297 = vadd.f32 0.0, %v1296
      %v1298 = vpop.f32.mrb[0].mxu0
      %1299 = vmatprep.mubr.f32.mxu0 0.0
      %1300 = vmatmul.mubr.f32.gmra.mrb[0].mxu0 %v911
      %v1301 = vpop.f32.mrb[0].mxu0
      %v1302 = vadd.f32 0.0, %v1301
      %v1303 = vpop.f32.mrb[0].mxu0
      %1304 = vmatprep.mubr.f32.mxu0 0.0
      %1305 = vmatmul.mubr.f32.gmra.mrb[0].mxu0 %v912
      %v1306 = vpop.f32.mrb[0].mxu0
      %v1307 = vadd.f32 0.0, %v1306
      %v1308 = vpop.f32.mrb[0].mxu0
      %1309 = vmatprep.mubr.f32.mxu0 0.0
      %1310 = vmatmul.mubr.f32.gmra.mrb[0].mxu0 %v913
      %v1311 = vpop.f32.mrb[0].mxu0
      %v1312 = vadd.f32 0.0, %v1311
      %v1313 = vpop.f32.mrb[0].mxu0
      %1314 = vdwg.mxu0
      %v1315 = vmax.f32 %v997, 0.0
      %v1316 = vmax.f32 %v1002, 0.0
      %v1317 = vmax.f32 %v1007, 0.0
      %v1318 = vmax.f32 %v1012, 0.0
      %v1319 = vmax.f32 %v1017, 0.0
      %v1320 = vmax.f32 %v1022, 0.0
      %v1321 = vmax.f32 %v1027, 0.0
      %v1322 = vmax.f32 %v1032, 0.0
      %v1323 = vmax.f32 %v1037, 0.0
      %v1324 = vmax.f32 %v1042, 0.0
      %v1325 = vmax.f32 %v1047, 0.0
      %v1326 = vmax.f32 %v1052, 0.0
      %v1327 = vmax.f32 %v1057, 0.0
      %v1328 = vmax.f32 %v1062, 0.0
      %v1329 = vmax.f32 %v1067, 0.0
      %v1330 = vmax.f32 %v1072, 0.0
      %v1331 = vmax.f32 %v1077, 0.0
      %v1332 = vmax.f32 %v1082, 0.0
      %v1333 = vmax.f32 %v1087, 0.0
      %v1334 = vmax.f32 %v1092, 0.0
      %v1335 = vmax.f32 %v1097, 0.0
      %v1336 = vmax.f32 %v1102, 0.0
      %v1337 = vmax.f32 %v1107, 0.0
      %v1338 = vmax.f32 %v1112, 0.0
      %v1339 = vmax.f32 %v1117, 0.0
      %v1340 = vmax.f32 %v1122, 0.0
      %v1341 = vmax.f32 %v1127, 0.0
      %v1342 = vmax.f32 %v1132, 0.0
      %v1343 = vmax.f32 %v1137, 0.0
      %v1344 = vmax.f32 %v1142, 0.0
      %v1345 = vmax.f32 %v1147, 0.0
      %v1346 = vmax.f32 %v1152, 0.0
      %v1347 = vmax.f32 %v1157, 0.0
      %v1348 = vmax.f32 %v1162, 0.0
      %v1349 = vmax.f32 %v1167, 0.0
      %v1350 = vmax.f32 %v1172, 0.0
      %v1351 = vmax.f32 %v1177, 0.0
      %v1352 = vmax.f32 %v1182, 0.0
      %v1353 = vmax.f32 %v1187, 0.0
      %v1354 = vmax.f32 %v1192, 0.0
      %v1355 = vmax.f32 %v1197, 0.0
      %v1356 = vmax.f32 %v1202, 0.0
      %v1357 = vmax.f32 %v1207, 0.0
      %v1358 = vmax.f32 %v1212, 0.0
      %v1359 = vmax.f32 %v1217, 0.0
      %v1360 = vmax.f32 %v1222, 0.0
      %v1361 = vmax.f32 %v1227, 0.0
      %v1362 = vmax.f32 %v1232, 0.0
      %v1363 = vmax.f32 %v1237, 0.0
      %v1364 = vmax.f32 %v1242, 0.0
      %v1365 = vmax.f32 %v1247, 0.0
      %v1366 = vmax.f32 %v1252, 0.0
      %v1367 = vmax.f32 %v1257, 0.0
      %v1368 = vmax.f32 %v1262, 0.0
      %v1369 = vmax.f32 %v1267, 0.0
      %v1370 = vmax.f32 %v1272, 0.0
      %v1371 = vmax.f32 %v1277, 0.0
      %v1372 = vmax.f32 %v1282, 0.0
      %v1373 = vmax.f32 %v1287, 0.0
      %v1374 = vmax.f32 %v1292, 0.0
      %v1375 = vmax.f32 %v1297, 0.0
      %v1376 = vmax.f32 %v1302, 0.0
      %v1377 = vmax.f32 %v1307, 0.0
      %v1378 = vmax.f32 %v1312, 0.0
      %v1379 = vld [vmem:[%s3] sm:$0xff]
      %v1380 = vld [vmem:[%s3 + $0x8] sm:$0xff]
      %v1381 = vld [vmem:[%s3 + $0x10] sm:$0xff]
      %v1382 = vld [vmem:[%s3 + $0x18] sm:$0xff]
      %v1383 = vld [vmem:[%s3 + $0x20] sm:$0xff]
      %v1384 = vld [vmem:[%s3 + $0x28] sm:$0xff]
      %v1385 = vld [vmem:[%s3 + $0x30] sm:$0xff]
      %v1386 = vld [vmem:[%s3 + $0x38] sm:$0xff]
      %v1387 = vld [vmem:[%s3 + $0x40] sm:$0xff]
      %v1388 = vld [vmem:[%s3 + $0x48] sm:$0xff]
      %v1389 = vld [vmem:[%s3 + $0x50] sm:$0xff]
      %v1390 = vld [vmem:[%s3 + $0x58] sm:$0xff]
      %v1391 = vld [vmem:[%s3 + $0x60] sm:$0xff]
      %v1392 = vld [vmem:[%s3 + $0x68] sm:$0xff]
      %v1393 = vld [vmem:[%s3 + $0x70] sm:$0xff]
      %v1394 = vld [vmem:[%s3 + $0x78] sm:$0xff]
      %1395 = vmatprep.subr.mxu0 0.0
      %1396 = vmatpush1.msra.mxu0 %v1379
      %1397 = vmatprep.subr.mxu0 0.0
      %1398 = vmatpush1.msra.mxu0 %v1380
      %1399 = vmatprep.subr.mxu0 0.0
      %1400 = vmatpush1.msra.mxu0 %v1381
      %1401 = vmatprep.subr.mxu0 0.0
      %1402 = vmatpush1.msra.mxu0 %v1382
      %1403 = vmatprep.subr.mxu0 0.0
      %1404 = vmatpush1.msra.mxu0 %v1383
      %1405 = vmatprep.subr.mxu0 0.0
      %1406 = vmatpush1.msra.mxu0 %v1384
      %1407 = vmatprep.subr.mxu0 0.0
      %1408 = vmatpush1.msra.mxu0 %v1385
      %1409 = vmatprep.subr.mxu0 0.0
      %1410 = vmatpush1.msra.mxu0 %v1386
      %1411 = vmatprep.subr.mxu0 0.0
      %1412 = vmatpush1.msra.mxu0 %v1387
      %1413 = vmatprep.subr.mxu0 0.0
      %1414 = vmatpush1.msra.mxu0 %v1388
      %1415 = vmatprep.subr.mxu0 0.0
      %1416 = vmatpush1.msra.mxu0 %v1389
      %1417 = vmatprep.subr.mxu0 0.0
      %1418 = vmatpush1.msra.mxu0 %v1390
      %1419 = vmatprep.subr.mxu0 0.0
      %1420 = vmatpush1.msra.mxu0 %v1391
      %1421 = vmatprep.subr.mxu0 0.0
      %1422 = vmatpush1.msra.mxu0 %v1392
      %1423 = vmatprep.subr.mxu0 0.0
      %1424 = vmatpush1.msra.mxu0 %v1393
      %1425 = vmatprep.subr.mxu0 0.0
      %1426 = vmatpush1.msra.mxu0 %v1394
      %1427 = vmatprep.subr.mxu0 0.0
      %1428 = vmatpush1.msra.mxu0 0.0
      %1429 = vmatprep.subr.mxu0 0.0
      %1430 = vmatpush1.msra.mxu0 0.0
      %1431 = vmatprep.subr.mxu0 0.0
      %1432 = vmatpush1.msra.mxu0 0.0
      %1433 = vmatprep.subr.mxu0 0.0
      %1434 = vmatpush1.msra.mxu0 0.0
      %1435 = vmatprep.subr.mxu0 0.0
      %1436 = vmatpush1.msra.mxu0 0.0
      %1437 = vmatprep.subr.mxu0 0.0
      %1438 = vmatpush1.msra.mxu0 0.0
      %1439 = vmatprep.subr.mxu0 0.0
      %1440 = vmatpush1.msra.mxu0 0.0
      %1441 = vmatprep.subr.mxu0 0.0
      %1442 = vmatpush1.msra.mxu0 0.0
      %1443 = vmatprep.subr.mxu0 0.0
      %1444 = vmatpush1.msra.mxu0 0.0
      %1445 = vmatprep.subr.mxu0 0.0
      %1446 = vmatpush1.msra.mxu0 0.0
      %1447 = vmatprep.subr.mxu0 0.0
      %1448 = vmatpush1.msra.mxu0 0.0
      %1449 = vmatprep.subr.mxu0 0.0
      %1450 = vmatpush1.msra.mxu0 0.0
      %1451 = vmatprep.subr.mxu0 0.0
      %1452 = vmatpush1.msra.mxu0 0.0
      %1453 = vmatprep.subr.mxu0 0.0
      %1454 = vmatpush1.msra.mxu0 0.0
      %1455 = vmatprep.subr.mxu0 0.0
      %1456 = vmatpush1.msra.mxu0 0.0
      %1457 = vmatprep.subr.mxu0 0.0
      %1458 = vmatpush1.msra.mxu0 0.0
      %1459 = vmatprep.mubr.f32.mxu0 0.0
      %1460 = vmatmul.mubr.f32.gmra.mrb[0].mxu0 %v1315
      %v1461 = vpop.f32.mrb[0].mxu0
      %v1462 = vadd.f32 0.0, %v1461
      %v1463 = vpop.f32.mrb[0].mxu0
      %1464 = vmatprep.mubr.f32.mxu0 0.0
      %1465 = vmatmul.mubr.f32.gmra.mrb[0].mxu0 %v1316
      %v1466 = vpop.f32.mrb[0].mxu0
      %v1467 = vadd.f32 0.0, %v1466
      %v1468 = vpop.f32.mrb[0].mxu0
      %1469 = vmatprep.mubr.f32.mxu0 0.0
      %1470 = vmatmul.mubr.f32.gmra.mrb[0].mxu0 %v1317
      %v1471 = vpop.f32.mrb[0].mxu0
      %v1472 = vadd.f32 0.0, %v1471
      %v1473 = vpop.f32.mrb[0].mxu0
      %1474 = vmatprep.mubr.f32.mxu0 0.0
      %1475 = vmatmul.mubr.f32.gmra.mrb[0].mxu0 %v1318
      %v1476 = vpop.f32.mrb[0].mxu0
      %v1477 = vadd.f32 0.0, %v1476
      %v1478 = vpop.f32.mrb[0].mxu0
      %1479 = vmatprep.mubr.f32.mxu0 0.0
      %1480 = vmatmul.mubr.f32.gmra.mrb[0].mxu0 %v1319
      %v1481 = vpop.f32.mrb[0].mxu0
      %v1482 = vadd.f32 0.0, %v1481
      %v1483 = vpop.f32.mrb[0].mxu0
      %1484 = vmatprep.mubr.f32.mxu0 0.0
      %1485 = vmatmul.mubr.f32.gmra.mrb[0].mxu0 %v1320
      %v1486 = vpop.f32.mrb[0].mxu0
      %v1487 = vadd.f32 0.0, %v1486
      %v1488 = vpop.f32.mrb[0].mxu0
      %1489 = vmatprep.mubr.f32.mxu0 0.0
      %1490 = vmatmul.mubr.f32.gmra.mrb[0].mxu0 %v1321
      %v1491 = vpop.f32.mrb[0].mxu0
      %v1492 = vadd.f32 0.0, %v1491
      %v1493 = vpop.f32.mrb[0].mxu0
      %1494 = vmatprep.mubr.f32.mxu0 0.0
      %1495 = vmatmul.mubr.f32.gmra.mrb[0].mxu0 %v1322
      %v1496 = vpop.f32.mrb[0].mxu0
      %v1497 = vadd.f32 0.0, %v1496
      %v1498 = vpop.f32.mrb[0].mxu0
      %1499 = vmatprep.mubr.f32.mxu0 0.0
      %1500 = vmatmul.mubr.f32.gmra.mrb[0].mxu0 %v1323
      %v1501 = vpop.f32.mrb[0].mxu0
      %v1502 = vadd.f32 0.0, %v1501
      %v1503 = vpop.f32.mrb[0].mxu0
      %1504 = vmatprep.mubr.f32.mxu0 0.0
      %1505 = vmatmul.mubr.f32.gmra.mrb[0].mxu0 %v1324
      %v1506 = vpop.f32.mrb[0].mxu0
      %v1507 = vadd.f32 0.0, %v1506
      %v1508 = vpop.f32.mrb[0].mxu0
      %1509 = vmatprep.mubr.f32.mxu0 0.0
      %1510 = vmatmul.mubr.f32.gmra.mrb[0].mxu0 %v1325
      %v1511 = vpop.f32.mrb[0].mxu0
      %v1512 = vadd.f32 0.0, %v1511
      %v1513 = vpop.f32.mrb[0].mxu0
      %1514 = vmatprep.mubr.f32.mxu0 0.0
      %1515 = vmatmul.mubr.f32.gmra.mrb[0].mxu0 %v1326
      %v1516 = vpop.f32.mrb[0].mxu0
      %v1517 = vadd.f32 0.0, %v1516
      %v1518 = vpop.f32.mrb[0].mxu0
      %1519 = vmatprep.mubr.f32.mxu0 0.0
      %1520 = vmatmul.mubr.f32.gmra.mrb[0].mxu0 %v1327
      %v1521 = vpop.f32.mrb[0].mxu0
      %v1522 = vadd.f32 0.0, %v1521
      %v1523 = vpop.f32.mrb[0].mxu0
      %1524 = vmatprep.mubr.f32.mxu0 0.0
      %1525 = vmatmul.mubr.f32.gmra.mrb[0].mxu0 %v1328
      %v1526 = vpop.f32.mrb[0].mxu0
      %v1527 = vadd.f32 0.0, %v1526
      %v1528 = vpop.f32.mrb[0].mxu0
      %1529 = vmatprep.mubr.f32.mxu0 0.0
      %1530 = vmatmul.mubr.f32.gmra.mrb[0].mxu0 %v1329
      %v1531 = vpop.f32.mrb[0].mxu0
      %v1532 = vadd.f32 0.0, %v1531
      %v1533 = vpop.f32.mrb[0].mxu0
      %1534 = vmatprep.mubr.f32.mxu0 0.0
      %1535 = vmatmul.mubr.f32.gmra.mrb[0].mxu0 %v1330
      %v1536 = vpop.f32.mrb[0].mxu0
      %v1537 = vadd.f32 0.0, %v1536
      %v1538 = vpop.f32.mrb[0].mxu0
      %1539 = vmatprep.mubr.f32.mxu0 0.0
      %1540 = vmatmul.mubr.f32.gmra.mrb[0].mxu0 %v1331
      %v1541 = vpop.f32.mrb[0].mxu0
      %v1542 = vadd.f32 0.0, %v1541
      %v1543 = vpop.f32.mrb[0].mxu0
      %1544 = vmatprep.mubr.f32.mxu0 0.0
      %1545 = vmatmul.mubr.f32.gmra.mrb[0].mxu0 %v1332
      %v1546 = vpop.f32.mrb[0].mxu0
      %v1547 = vadd.f32 0.0, %v1546
      %v1548 = vpop.f32.mrb[0].mxu0
      %1549 = vmatprep.mubr.f32.mxu0 0.0
      %1550 = vmatmul.mubr.f32.gmra.mrb[0].mxu0 %v1333
      %v1551 = vpop.f32.mrb[0].mxu0
      %v1552 = vadd.f32 0.0, %v1551
      %v1553 = vpop.f32.mrb[0].mxu0
      %1554 = vmatprep.mubr.f32.mxu0 0.0
      %1555 = vmatmul.mubr.f32.gmra.mrb[0].mxu0 %v1334
      %v1556 = vpop.f32.mrb[0].mxu0
      %v1557 = vadd.f32 0.0, %v1556
      %v1558 = vpop.f32.mrb[0].mxu0
      %1559 = vmatprep.mubr.f32.mxu0 0.0
      %1560 = vmatmul.mubr.f32.gmra.mrb[0].mxu0 %v1335
      %v1561 = vpop.f32.mrb[0].mxu0
      %v1562 = vadd.f32 0.0, %v1561
      %v1563 = vpop.f32.mrb[0].mxu0
      %1564 = vmatprep.mubr.f32.mxu0 0.0
      %1565 = vmatmul.mubr.f32.gmra.mrb[0].mxu0 %v1336
      %v1566 = vpop.f32.mrb[0].mxu0
      %v1567 = vadd.f32 0.0, %v1566
      %v1568 = vpop.f32.mrb[0].mxu0
      %1569 = vmatprep.mubr.f32.mxu0 0.0
      %1570 = vmatmul.mubr.f32.gmra.mrb[0].mxu0 %v1337
      %v1571 = vpop.f32.mrb[0].mxu0
      %v1572 = vadd.f32 0.0, %v1571
      %v1573 = vpop.f32.mrb[0].mxu0
      %1574 = vmatprep.mubr.f32.mxu0 0.0
      %1575 = vmatmul.mubr.f32.gmra.mrb[0].mxu0 %v1338
      %v1576 = vpop.f32.mrb[0].mxu0
      %v1577 = vadd.f32 0.0, %v1576
      %v1578 = vpop.f32.mrb[0].mxu0
      %1579 = vmatprep.mubr.f32.mxu0 0.0
      %1580 = vmatmul.mubr.f32.gmra.mrb[0].mxu0 %v1339
      %v1581 = vpop.f32.mrb[0].mxu0
      %v1582 = vadd.f32 0.0, %v1581
      %v1583 = vpop.f32.mrb[0].mxu0
      %1584 = vmatprep.mubr.f32.mxu0 0.0
      %1585 = vmatmul.mubr.f32.gmra.mrb[0].mxu0 %v1340
      %v1586 = vpop.f32.mrb[0].mxu0
      %v1587 = vadd.f32 0.0, %v1586
      %v1588 = vpop.f32.mrb[0].mxu0
      %1589 = vmatprep.mubr.f32.mxu0 0.0
      %1590 = vmatmul.mubr.f32.gmra.mrb[0].mxu0 %v1341
      %v1591 = vpop.f32.mrb[0].mxu0
      %v1592 = vadd.f32 0.0, %v1591
      %v1593 = vpop.f32.mrb[0].mxu0
      %1594 = vmatprep.mubr.f32.mxu0 0.0
      %1595 = vmatmul.mubr.f32.gmra.mrb[0].mxu0 %v1342
      %v1596 = vpop.f32.mrb[0].mxu0
      %v1597 = vadd.f32 0.0, %v1596
      %v1598 = vpop.f32.mrb[0].mxu0
      %1599 = vmatprep.mubr.f32.mxu0 0.0
      %1600 = vmatmul.mubr.f32.gmra.mrb[0].mxu0 %v1343
      %v1601 = vpop.f32.mrb[0].mxu0
      %v1602 = vadd.f32 0.0, %v1601
      %v1603 = vpop.f32.mrb[0].mxu0
      %1604 = vmatprep.mubr.f32.mxu0 0.0
      %1605 = vmatmul.mubr.f32.gmra.mrb[0].mxu0 %v1344
      %v1606 = vpop.f32.mrb[0].mxu0
      %v1607 = vadd.f32 0.0, %v1606
      %v1608 = vpop.f32.mrb[0].mxu0
      %1609 = vmatprep.mubr.f32.mxu0 0.0
      %1610 = vmatmul.mubr.f32.gmra.mrb[0].mxu0 %v1345
      %v1611 = vpop.f32.mrb[0].mxu0
      %v1612 = vadd.f32 0.0, %v1611
      %v1613 = vpop.f32.mrb[0].mxu0
      %1614 = vmatprep.mubr.f32.mxu0 0.0
      %1615 = vmatmul.mubr.f32.gmra.mrb[0].mxu0 %v1346
      %v1616 = vpop.f32.mrb[0].mxu0
      %v1617 = vadd.f32 0.0, %v1616
      %v1618 = vpop.f32.mrb[0].mxu0
      %1619 = vmatprep.mubr.f32.mxu0 0.0
      %1620 = vmatmul.mubr.f32.gmra.mrb[0].mxu0 %v1347
      %v1621 = vpop.f32.mrb[0].mxu0
      %v1622 = vadd.f32 0.0, %v1621
      %v1623 = vpop.f32.mrb[0].mxu0
      %1624 = vmatprep.mubr.f32.mxu0 0.0
      %1625 = vmatmul.mubr.f32.gmra.mrb[0].mxu0 %v1348
      %v1626 = vpop.f32.mrb[0].mxu0
      %v1627 = vadd.f32 0.0, %v1626
      %v1628 = vpop.f32.mrb[0].mxu0
      %1629 = vmatprep.mubr.f32.mxu0 0.0
      %1630 = vmatmul.mubr.f32.gmra.mrb[0].mxu0 %v1349
      %v1631 = vpop.f32.mrb[0].mxu0
      %v1632 = vadd.f32 0.0, %v1631
      %v1633 = vpop.f32.mrb[0].mxu0
      %1634 = vmatprep.mubr.f32.mxu0 0.0
      %1635 = vmatmul.mubr.f32.gmra.mrb[0].mxu0 %v1350
      %v1636 = vpop.f32.mrb[0].mxu0
      %v1637 = vadd.f32 0.0, %v1636
      %v1638 = vpop.f32.mrb[0].mxu0
      %1639 = vmatprep.mubr.f32.mxu0 0.0
      %1640 = vmatmul.mubr.f32.gmra.mrb[0].mxu0 %v1351
      %v1641 = vpop.f32.mrb[0].mxu0
      %v1642 = vadd.f32 0.0, %v1641
      %v1643 = vpop.f32.mrb[0].mxu0
      %1644 = vmatprep.mubr.f32.mxu0 0.0
      %1645 = vmatmul.mubr.f32.gmra.mrb[0].mxu0 %v1352
      %v1646 = vpop.f32.mrb[0].mxu0
      %v1647 = vadd.f32 0.0, %v1646
      %v1648 = vpop.f32.mrb[0].mxu0
      %1649 = vmatprep.mubr.f32.mxu0 0.0
      %1650 = vmatmul.mubr.f32.gmra.mrb[0].mxu0 %v1353
      %v1651 = vpop.f32.mrb[0].mxu0
      %v1652 = vadd.f32 0.0, %v1651
      %v1653 = vpop.f32.mrb[0].mxu0
      %1654 = vmatprep.mubr.f32.mxu0 0.0
      %1655 = vmatmul.mubr.f32.gmra.mrb[0].mxu0 %v1354
      %v1656 = vpop.f32.mrb[0].mxu0
      %v1657 = vadd.f32 0.0, %v1656
      %v1658 = vpop.f32.mrb[0].mxu0
      %1659 = vmatprep.mubr.f32.mxu0 0.0
      %1660 = vmatmul.mubr.f32.gmra.mrb[0].mxu0 %v1355
      %v1661 = vpop.f32.mrb[0].mxu0
      %v1662 = vadd.f32 0.0, %v1661
      %v1663 = vpop.f32.mrb[0].mxu0
      %1664 = vmatprep.mubr.f32.mxu0 0.0
      %1665 = vmatmul.mubr.f32.gmra.mrb[0].mxu0 %v1356
      %v1666 = vpop.f32.mrb[0].mxu0
      %v1667 = vadd.f32 0.0, %v1666
      %v1668 = vpop.f32.mrb[0].mxu0
      %1669 = vmatprep.mubr.f32.mxu0 0.0
      %1670 = vmatmul.mubr.f32.gmra.mrb[0].mxu0 %v1357
      %v1671 = vpop.f32.mrb[0].mxu0
      %v1672 = vadd.f32 0.0, %v1671
      %v1673 = vpop.f32.mrb[0].mxu0
      %1674 = vmatprep.mubr.f32.mxu0 0.0
      %1675 = vmatmul.mubr.f32.gmra.mrb[0].mxu0 %v1358
      %v1676 = vpop.f32.mrb[0].mxu0
      %v1677 = vadd.f32 0.0, %v1676
      %v1678 = vpop.f32.mrb[0].mxu0
      %1679 = vmatprep.mubr.f32.mxu0 0.0
      %1680 = vmatmul.mubr.f32.gmra.mrb[0].mxu0 %v1359
      %v1681 = vpop.f32.mrb[0].mxu0
      %v1682 = vadd.f32 0.0, %v1681
      %v1683 = vpop.f32.mrb[0].mxu0
      %1684 = vmatprep.mubr.f32.mxu0 0.0
      %1685 = vmatmul.mubr.f32.gmra.mrb[0].mxu0 %v1360
      %v1686 = vpop.f32.mrb[0].mxu0
      %v1687 = vadd.f32 0.0, %v1686
      %v1688 = vpop.f32.mrb[0].mxu0
      %1689 = vmatprep.mubr.f32.mxu0 0.0
      %1690 = vmatmul.mubr.f32.gmra.mrb[0].mxu0 %v1361
      %v1691 = vpop.f32.mrb[0].mxu0
      %v1692 = vadd.f32 0.0, %v1691
      %v1693 = vpop.f32.mrb[0].mxu0
      %1694 = vmatprep.mubr.f32.mxu0 0.0
      %1695 = vmatmul.mubr.f32.gmra.mrb[0].mxu0 %v1362
      %v1696 = vpop.f32.mrb[0].mxu0
      %v1697 = vadd.f32 0.0, %v1696
      %v1698 = vpop.f32.mrb[0].mxu0
      %1699 = vmatprep.mubr.f32.mxu0 0.0
      %1700 = vmatmul.mubr.f32.gmra.mrb[0].mxu0 %v1363
      %v1701 = vpop.f32.mrb[0].mxu0
      %v1702 = vadd.f32 0.0, %v1701
      %v1703 = vpop.f32.mrb[0].mxu0
      %1704 = vmatprep.mubr.f32.mxu0 0.0
      %1705 = vmatmul.mubr.f32.gmra.mrb[0].mxu0 %v1364
      %v1706 = vpop.f32.mrb[0].mxu0
      %v1707 = vadd.f32 0.0, %v1706
      %v1708 = vpop.f32.mrb[0].mxu0
      %1709 = vmatprep.mubr.f32.mxu0 0.0
      %1710 = vmatmul.mubr.f32.gmra.mrb[0].mxu0 %v1365
      %v1711 = vpop.f32.mrb[0].mxu0
      %v1712 = vadd.f32 0.0, %v1711
      %v1713 = vpop.f32.mrb[0].mxu0
      %1714 = vmatprep.mubr.f32.mxu0 0.0
      %1715 = vmatmul.mubr.f32.gmra.mrb[0].mxu0 %v1366
      %v1716 = vpop.f32.mrb[0].mxu0
      %v1717 = vadd.f32 0.0, %v1716
      %v1718 = vpop.f32.mrb[0].mxu0
      %1719 = vmatprep.mubr.f32.mxu0 0.0
      %1720 = vmatmul.mubr.f32.gmra.mrb[0].mxu0 %v1367
      %v1721 = vpop.f32.mrb[0].mxu0
      %v1722 = vadd.f32 0.0, %v1721
      %v1723 = vpop.f32.mrb[0].mxu0
      %1724 = vmatprep.mubr.f32.mxu0 0.0
      %1725 = vmatmul.mubr.f32.gmra.mrb[0].mxu0 %v1368
      %v1726 = vpop.f32.mrb[0].mxu0
      %v1727 = vadd.f32 0.0, %v1726
      %v1728 = vpop.f32.mrb[0].mxu0
      %1729 = vmatprep.mubr.f32.mxu0 0.0
      %1730 = vmatmul.mubr.f32.gmra.mrb[0].mxu0 %v1369
      %v1731 = vpop.f32.mrb[0].mxu0
      %v1732 = vadd.f32 0.0, %v1731
      %v1733 = vpop.f32.mrb[0].mxu0
      %1734 = vmatprep.mubr.f32.mxu0 0.0
      %1735 = vmatmul.mubr.f32.gmra.mrb[0].mxu0 %v1370
      %v1736 = vpop.f32.mrb[0].mxu0
      %v1737 = vadd.f32 0.0, %v1736
      %v1738 = vpop.f32.mrb[0].mxu0
      %1739 = vmatprep.mubr.f32.mxu0 0.0
      %1740 = vmatmul.mubr.f32.gmra.mrb[0].mxu0 %v1371
      %v1741 = vpop.f32.mrb[0].mxu0
      %v1742 = vadd.f32 0.0, %v1741
      %v1743 = vpop.f32.mrb[0].mxu0
      %1744 = vmatprep.mubr.f32.mxu0 0.0
      %1745 = vmatmul.mubr.f32.gmra.mrb[0].mxu0 %v1372
      %v1746 = vpop.f32.mrb[0].mxu0
      %v1747 = vadd.f32 0.0, %v1746
      %v1748 = vpop.f32.mrb[0].mxu0
      %1749 = vmatprep.mubr.f32.mxu0 0.0
      %1750 = vmatmul.mubr.f32.gmra.mrb[0].mxu0 %v1373
      %v1751 = vpop.f32.mrb[0].mxu0
      %v1752 = vadd.f32 0.0, %v1751
      %v1753 = vpop.f32.mrb[0].mxu0
      %1754 = vmatprep.mubr.f32.mxu0 0.0
      %1755 = vmatmul.mubr.f32.gmra.mrb[0].mxu0 %v1374
      %v1756 = vpop.f32.mrb[0].mxu0
      %v1757 = vadd.f32 0.0, %v1756
      %v1758 = vpop.f32.mrb[0].mxu0
      %1759 = vmatprep.mubr.f32.mxu0 0.0
      %1760 = vmatmul.mubr.f32.gmra.mrb[0].mxu0 %v1375
      %v1761 = vpop.f32.mrb[0].mxu0
      %v1762 = vadd.f32 0.0, %v1761
      %v1763 = vpop.f32.mrb[0].mxu0
      %1764 = vmatprep.mubr.f32.mxu0 0.0
      %1765 = vmatmul.mubr.f32.gmra.mrb[0].mxu0 %v1376
      %v1766 = vpop.f32.mrb[0].mxu0
      %v1767 = vadd.f32 0.0, %v1766
      %v1768 = vpop.f32.mrb[0].mxu0
      %1769 = vmatprep.mubr.f32.mxu0 0.0
      %1770 = vmatmul.mubr.f32.gmra.mrb[0].mxu0 %v1377
      %v1771 = vpop.f32.mrb[0].mxu0
      %v1772 = vadd.f32 0.0, %v1771
      %v1773 = vpop.f32.mrb[0].mxu0
      %1774 = vmatprep.mubr.f32.mxu0 0.0
      %1775 = vmatmul.mubr.f32.gmra.mrb[0].mxu0 %v1378
      %v1776 = vpop.f32.mrb[0].mxu0
      %v1777 = vadd.f32 0.0, %v1776
      %v1778 = vpop.f32.mrb[0].mxu0
      %1779 = vdwg.mxu0
      %v1780 = vmul.f32 %v1462, 1.442695
      %v1781 = vpow.pop %v1780
      %v1782 = vmul.f32 %v1467, 1.442695
      %v1783 = vpow.pop %v1782
      %v1784 = vmul.f32 %v1472, 1.442695
      %v1785 = vpow.pop %v1784
      %v1786 = vmul.f32 %v1477, 1.442695
      %v1787 = vpow.pop %v1786
      %v1788 = vmul.f32 %v1482, 1.442695
      %v1789 = vpow.pop %v1788
      %v1790 = vmul.f32 %v1487, 1.442695
      %v1791 = vpow.pop %v1790
      %v1792 = vmul.f32 %v1492, 1.442695
      %v1793 = vpow.pop %v1792
      %v1794 = vmul.f32 %v1497, 1.442695
      %v1795 = vpow.pop %v1794
      %v1796 = vmul.f32 %v1502, 1.442695
      %v1797 = vpow.pop %v1796
      %v1798 = vmul.f32 %v1507, 1.442695
      %v1799 = vpow.pop %v1798
      %v1800 = vmul.f32 %v1512, 1.442695
      %v1801 = vpow.pop %v1800
      %v1802 = vmul.f32 %v1517, 1.442695
      %v1803 = vpow.pop %v1802
      %v1804 = vmul.f32 %v1522, 1.442695
      %v1805 = vpow.pop %v1804
      %v1806 = vmul.f32 %v1527, 1.442695
      %v1807 = vpow.pop %v1806
      %v1808 = vmul.f32 %v1532, 1.442695
      %v1809 = vpow.pop %v1808
      %v1810 = vmul.f32 %v1537, 1.442695
      %v1811 = vpow.pop %v1810
      %v1812 = vmul.f32 %v1542, 1.442695
      %v1813 = vpow.pop %v1812
      %v1814 = vmul.f32 %v1547, 1.442695
      %v1815 = vpow.pop %v1814
      %v1816 = vmul.f32 %v1552, 1.442695
      %v1817 = vpow.pop %v1816
      %v1818 = vmul.f32 %v1557, 1.442695
      %v1819 = vpow.pop %v1818
      %v1820 = vmul.f32 %v1562, 1.442695
      %v1821 = vpow.pop %v1820
      %v1822 = vmul.f32 %v1567, 1.442695
      %v1823 = vpow.pop %v1822
      %v1824 = vmul.f32 %v1572, 1.442695
      %v1825 = vpow.pop %v1824
      %v1826 = vmul.f32 %v1577, 1.442695
      %v1827 = vpow.pop %v1826
      %v1828 = vmul.f32 %v1582, 1.442695
      %v1829 = vpow.pop %v1828
      %v1830 = vmul.f32 %v1587, 1.442695
      %v1831 = vpow.pop %v1830
      %v1832 = vmul.f32 %v1592, 1.442695
      %v1833 = vpow.pop %v1832
      %v1834 = vmul.f32 %v1597, 1.442695
      %v1835 = vpow.pop %v1834
      %v1836 = vmul.f32 %v1602, 1.442695
      %v1837 = vpow.pop %v1836
      %v1838 = vmul.f32 %v1607, 1.442695
      %v1839 = vpow.pop %v1838
      %v1840 = vmul.f32 %v1612, 1.442695
      %v1841 = vpow.pop %v1840
      %v1842 = vmul.f32 %v1617, 1.442695
      %v1843 = vpow.pop %v1842
      %v1844 = vmul.f32 %v1622, 1.442695
      %v1845 = vpow.pop %v1844
      %v1846 = vmul.f32 %v1627, 1.442695
      %v1847 = vpow.pop %v1846
      %v1848 = vmul.f32 %v1632, 1.442695
      %v1849 = vpow.pop %v1848
      %v1850 = vmul.f32 %v1637, 1.442695
      %v1851 = vpow.pop %v1850
      %v1852 = vmul.f32 %v1642, 1.442695
      %v1853 = vpow.pop %v1852
      %v1854 = vmul.f32 %v1647, 1.442695
      %v1855 = vpow.pop %v1854
      %v1856 = vmul.f32 %v1652, 1.442695
      %v1857 = vpow.pop %v1856
      %v1858 = vmul.f32 %v1657, 1.442695
      %v1859 = vpow.pop %v1858
      %v1860 = vmul.f32 %v1662, 1.442695
      %v1861 = vpow.pop %v1860
      %v1862 = vmul.f32 %v1667, 1.442695
      %v1863 = vpow.pop %v1862
      %v1864 = vmul.f32 %v1672, 1.442695
      %v1865 = vpow.pop %v1864
      %v1866 = vmul.f32 %v1677, 1.442695
      %v1867 = vpow.pop %v1866
      %v1868 = vmul.f32 %v1682, 1.442695
      %v1869 = vpow.pop %v1868
      %v1870 = vmul.f32 %v1687, 1.442695
      %v1871 = vpow.pop %v1870
      %v1872 = vmul.f32 %v1692, 1.442695
      %v1873 = vpow.pop %v1872
      %v1874 = vmul.f32 %v1697, 1.442695
      %v1875 = vpow.pop %v1874
      %v1876 = vmul.f32 %v1702, 1.442695
      %v1877 = vpow.pop %v1876
      %v1878 = vmul.f32 %v1707, 1.442695
      %v1879 = vpow.pop %v1878
      %v1880 = vmul.f32 %v1712, 1.442695
      %v1881 = vpow.pop %v1880
      %v1882 = vmul.f32 %v1717, 1.442695
      %v1883 = vpow.pop %v1882
      %v1884 = vmul.f32 %v1722, 1.442695
      %v1885 = vpow.pop %v1884
      %v1886 = vmul.f32 %v1727, 1.442695
      %v1887 = vpow.pop %v1886
      %v1888 = vmul.f32 %v1732, 1.442695
      %v1889 = vpow.pop %v1888
      %v1890 = vmul.f32 %v1737, 1.442695
      %v1891 = vpow.pop %v1890
      %v1892 = vmul.f32 %v1742, 1.442695
      %v1893 = vpow.pop %v1892
      %v1894 = vmul.f32 %v1747, 1.442695
      %v1895 = vpow.pop %v1894
      %v1896 = vmul.f32 %v1752, 1.442695
      %v1897 = vpow.pop %v1896
      %v1898 = vmul.f32 %v1757, 1.442695
      %v1899 = vpow.pop %v1898
      %v1900 = vmul.f32 %v1762, 1.442695
      %v1901 = vpow.pop %v1900
      %v1902 = vmul.f32 %v1767, 1.442695
      %v1903 = vpow.pop %v1902
      %v1904 = vmul.f32 %v1772, 1.442695
      %v1905 = vpow.pop %v1904
      %v1906 = vmul.f32 %v1777, 1.442695
      %v1907 = vpow.pop %v1906
      %1972 = vrot.lane.b32.xlu0 %v1781, 15
      %v1973 = vpop.permute.xlu0 %1972
      %1974 = vrot.lane.b32.xlu0 %v1783, 15
      %v1975 = vpop.permute.xlu0 %1974
      %1976 = vrot.lane.b32.xlu0 %v1785, 15
      %v1977 = vpop.permute.xlu0 %1976
      %1978 = vrot.lane.b32.xlu0 %v1787, 15
      %v1979 = vpop.permute.xlu0 %1978
      %1980 = vrot.lane.b32.xlu0 %v1789, 15
      %v1981 = vpop.permute.xlu0 %1980
      %1982 = vrot.lane.b32.xlu0 %v1791, 15
      %v1983 = vpop.permute.xlu0 %1982
      %1984 = vrot.lane.b32.xlu0 %v1793, 15
      %v1985 = vpop.permute.xlu0 %1984
      %1986 = vrot.lane.b32.xlu0 %v1795, 15
      %v1987 = vpop.permute.xlu0 %1986
      %1988 = vrot.lane.b32.xlu0 %v1797, 15
      %v1989 = vpop.permute.xlu0 %1988
      %1990 = vrot.lane.b32.xlu0 %v1799, 15
      %v1991 = vpop.permute.xlu0 %1990
      %1992 = vrot.lane.b32.xlu0 %v1801, 15
      %v1993 = vpop.permute.xlu0 %1992
      %1994 = vrot.lane.b32.xlu0 %v1803, 15
      %v1995 = vpop.permute.xlu0 %1994
      %1996 = vrot.lane.b32.xlu0 %v1805, 15
      %v1997 = vpop.permute.xlu0 %1996
      %1998 = vrot.lane.b32.xlu0 %v1807, 15
      %v1999 = vpop.permute.xlu0 %1998
      %2000 = vrot.lane.b32.xlu0 %v1809, 15
      %v2001 = vpop.permute.xlu0 %2000
      %2002 = vrot.lane.b32.xlu0 %v1811, 15
      %v2003 = vpop.permute.xlu0 %2002
      %2004 = vrot.lane.b32.xlu0 %v1813, 15
      %v2005 = vpop.permute.xlu0 %2004
      %2006 = vrot.lane.b32.xlu0 %v1815, 15
      %v2007 = vpop.permute.xlu0 %2006
      %2008 = vrot.lane.b32.xlu0 %v1817, 15
      %v2009 = vpop.permute.xlu0 %2008
      %2010 = vrot.lane.b32.xlu0 %v1819, 15
      %v2011 = vpop.permute.xlu0 %2010
      %2012 = vrot.lane.b32.xlu0 %v1821, 15
      %v2013 = vpop.permute.xlu0 %2012
      %2014 = vrot.lane.b32.xlu0 %v1823, 15
      %v2015 = vpop.permute.xlu0 %2014
      %2016 = vrot.lane.b32.xlu0 %v1825, 15
      %v2017 = vpop.permute.xlu0 %2016
      %2018 = vrot.lane.b32.xlu0 %v1827, 15
      %v2019 = vpop.permute.xlu0 %2018
      %2020 = vrot.lane.b32.xlu0 %v1829, 15
      %v2021 = vpop.permute.xlu0 %2020
      %2022 = vrot.lane.b32.xlu0 %v1831, 15
      %v2023 = vpop.permute.xlu0 %2022
      %2024 = vrot.lane.b32.xlu0 %v1833, 15
      %v2025 = vpop.permute.xlu0 %2024
      %2026 = vrot.lane.b32.xlu0 %v1835, 15
      %v2027 = vpop.permute.xlu0 %2026
      %2028 = vrot.lane.b32.xlu0 %v1837, 15
      %v2029 = vpop.permute.xlu0 %2028
      %2030 = vrot.lane.b32.xlu0 %v1839, 15
      %v2031 = vpop.permute.xlu0 %2030
      %2032 = vrot.lane.b32.xlu0 %v1841, 15
      %v2033 = vpop.permute.xlu0 %2032
      %2034 = vrot.lane.b32.xlu0 %v1843, 15
      %v2035 = vpop.permute.xlu0 %2034
      %2036 = vrot.lane.b32.xlu0 %v1845, 15
      %v2037 = vpop.permute.xlu0 %2036
      %2038 = vrot.lane.b32.xlu0 %v1847, 15
      %v2039 = vpop.permute.xlu0 %2038
      %2040 = vrot.lane.b32.xlu0 %v1849, 15
      %v2041 = vpop.permute.xlu0 %2040
      %2042 = vrot.lane.b32.xlu0 %v1851, 15
      %v2043 = vpop.permute.xlu0 %2042
      %2044 = vrot.lane.b32.xlu0 %v1853, 15
      %v2045 = vpop.permute.xlu0 %2044
      %2046 = vrot.lane.b32.xlu0 %v1855, 15
      %v2047 = vpop.permute.xlu0 %2046
      %2048 = vrot.lane.b32.xlu0 %v1857, 15
      %v2049 = vpop.permute.xlu0 %2048
      %2050 = vrot.lane.b32.xlu0 %v1859, 15
      %v2051 = vpop.permute.xlu0 %2050
      %2052 = vrot.lane.b32.xlu0 %v1861, 15
      %v2053 = vpop.permute.xlu0 %2052
      %2054 = vrot.lane.b32.xlu0 %v1863, 15
      %v2055 = vpop.permute.xlu0 %2054
      %2056 = vrot.lane.b32.xlu0 %v1865, 15
      %v2057 = vpop.permute.xlu0 %2056
      %2058 = vrot.lane.b32.xlu0 %v1867, 15
      %v2059 = vpop.permute.xlu0 %2058
      %2060 = vrot.lane.b32.xlu0 %v1869, 15
      %v2061 = vpop.permute.xlu0 %2060
      %2062 = vrot.lane.b32.xlu0 %v1871, 15
      %v2063 = vpop.permute.xlu0 %2062
      %2064 = vrot.lane.b32.xlu0 %v1873, 15
      %v2065 = vpop.permute.xlu0 %2064
      %2066 = vrot.lane.b32.xlu0 %v1875, 15
      %v2067 = vpop.permute.xlu0 %2066
      %2068 = vrot.lane.b32.xlu0 %v1877, 15
      %v2069 = vpop.permute.xlu0 %2068
      %2070 = vrot.lane.b32.xlu0 %v1879, 15
      %v2071 = vpop.permute.xlu0 %2070
      %2072 = vrot.lane.b32.xlu0 %v1881, 15
      %v2073 = vpop.permute.xlu0 %2072
      %2074 = vrot.lane.b32.xlu0 %v1883, 15
      %v2075 = vpop.permute.xlu0 %2074
      %2076 = vrot.lane.b32.xlu0 %v1885, 15
      %v2077 = vpop.permute.xlu0 %2076
      %2078 = vrot.lane.b32.xlu0 %v1887, 15
      %v2079 = vpop.permute.xlu0 %2078
      %2080 = vrot.lane.b32.xlu0 %v1889, 15
      %v2081 = vpop.permute.xlu0 %2080
      %2082 = vrot.lane.b32.xlu0 %v1891, 15
      %v2083 = vpop.permute.xlu0 %2082
      %2084 = vrot.lane.b32.xlu0 %v1893, 15
      %v2085 = vpop.permute.xlu0 %2084
      %2086 = vrot.lane.b32.xlu0 %v1895, 15
      %v2087 = vpop.permute.xlu0 %2086
      %2088 = vrot.lane.b32.xlu0 %v1897, 15
      %v2089 = vpop.permute.xlu0 %2088
      %2090 = vrot.lane.b32.xlu0 %v1899, 15
      %v2091 = vpop.permute.xlu0 %2090
      %2092 = vrot.lane.b32.xlu0 %v1901, 15
      %v2093 = vpop.permute.xlu0 %2092
      %2094 = vrot.lane.b32.xlu0 %v1903, 15
      %v2095 = vpop.permute.xlu0 %2094
      %2096 = vrot.lane.b32.xlu0 %v1905, 15
      %v2097 = vpop.permute.xlu0 %2096
      %2098 = vrot.lane.b32.xlu0 %v1907, 15
      %v2099 = vpop.permute.xlu0 %2098
      %v2164 = vmul.f32 %v201, %v1973
      %v2165 = vmul.f32 %v202, %v1975
      %v2166 = vmul.f32 %v203, %v1977
      %v2167 = vmul.f32 %v204, %v1979
      %v2168 = vmul.f32 %v205, %v1981
      %v2169 = vmul.f32 %v206, %v1983
      %v2170 = vmul.f32 %v207, %v1985
      %v2171 = vmul.f32 %v208, %v1987
      %v2172 = vmul.f32 %v209, %v1989
      %v2173 = vmul.f32 %v210, %v1991
      %v2174 = vmul.f32 %v211, %v1993
      %v2175 = vmul.f32 %v212, %v1995
      %v2176 = vmul.f32 %v213, %v1997
      %v2177 = vmul.f32 %v214, %v1999
      %v2178 = vmul.f32 %v215, %v2001
      %v2179 = vmul.f32 %v216, %v2003
      %v2180 = vmul.f32 %v217, %v2005
      %v2181 = vmul.f32 %v218, %v2007
      %v2182 = vmul.f32 %v219, %v2009
      %v2183 = vmul.f32 %v220, %v2011
      %v2184 = vmul.f32 %v221, %v2013
      %v2185 = vmul.f32 %v222, %v2015
      %v2186 = vmul.f32 %v223, %v2017
      %v2187 = vmul.f32 %v224, %v2019
      %v2188 = vmul.f32 %v225, %v2021
      %v2189 = vmul.f32 %v226, %v2023
      %v2190 = vmul.f32 %v227, %v2025
      %v2191 = vmul.f32 %v228, %v2027
      %v2192 = vmul.f32 %v229, %v2029
      %v2193 = vmul.f32 %v230, %v2031
      %v2194 = vmul.f32 %v231, %v2033
      %v2195 = vmul.f32 %v232, %v2035
      %v2196 = vmul.f32 %v233, %v2037
      %v2197 = vmul.f32 %v234, %v2039
      %v2198 = vmul.f32 %v235, %v2041
      %v2199 = vmul.f32 %v236, %v2043
      %v2200 = vmul.f32 %v237, %v2045
      %v2201 = vmul.f32 %v238, %v2047
      %v2202 = vmul.f32 %v239, %v2049
      %v2203 = vmul.f32 %v240, %v2051
      %v2204 = vmul.f32 %v241, %v2053
      %v2205 = vmul.f32 %v242, %v2055
      %v2206 = vmul.f32 %v243, %v2057
      %v2207 = vmul.f32 %v244, %v2059
      %v2208 = vmul.f32 %v245, %v2061
      %v2209 = vmul.f32 %v246, %v2063
      %v2210 = vmul.f32 %v247, %v2065
      %v2211 = vmul.f32 %v248, %v2067
      %v2212 = vmul.f32 %v249, %v2069
      %v2213 = vmul.f32 %v250, %v2071
      %v2214 = vmul.f32 %v251, %v2073
      %v2215 = vmul.f32 %v252, %v2075
      %v2216 = vmul.f32 %v253, %v2077
      %v2217 = vmul.f32 %v254, %v2079
      %v2218 = vmul.f32 %v255, %v2081
      %v2219 = vmul.f32 %v256, %v2083
      %v2220 = vmul.f32 %v257, %v2085
      %v2221 = vmul.f32 %v258, %v2087
      %v2222 = vmul.f32 %v259, %v2089
      %v2223 = vmul.f32 %v260, %v2091
      %v2224 = vmul.f32 %v261, %v2093
      %v2225 = vmul.f32 %v262, %v2095
      %v2226 = vmul.f32 %v263, %v2097
      %v2227 = vmul.f32 %v264, %v2099
      %2292 = vrot.lane.b32.xlu0 %v1462, 17
      %v2293 = vpop.permute.xlu0 %2292
      %2294 = vrot.lane.b32.xlu0 %v1467, 17
      %v2295 = vpop.permute.xlu0 %2294
      %2296 = vrot.lane.b32.xlu0 %v1472, 17
      %v2297 = vpop.permute.xlu0 %2296
      %2298 = vrot.lane.b32.xlu0 %v1477, 17
      %v2299 = vpop.permute.xlu0 %2298
      %2300 = vrot.lane.b32.xlu0 %v1482, 17
      %v2301 = vpop.permute.xlu0 %2300
      %2302 = vrot.lane.b32.xlu0 %v1487, 17
      %v2303 = vpop.permute.xlu0 %2302
      %2304 = vrot.lane.b32.xlu0 %v1492, 17
      %v2305 = vpop.permute.xlu0 %2304
      %2306 = vrot.lane.b32.xlu0 %v1497, 17
      %v2307 = vpop.permute.xlu0 %2306
      %2308 = vrot.lane.b32.xlu0 %v1502, 17
      %v2309 = vpop.permute.xlu0 %2308
      %2310 = vrot.lane.b32.xlu0 %v1507, 17
      %v2311 = vpop.permute.xlu0 %2310
      %2312 = vrot.lane.b32.xlu0 %v1512, 17
      %v2313 = vpop.permute.xlu0 %2312
      %2314 = vrot.lane.b32.xlu0 %v1517, 17
      %v2315 = vpop.permute.xlu0 %2314
      %2316 = vrot.lane.b32.xlu0 %v1522, 17
      %v2317 = vpop.permute.xlu0 %2316
      %2318 = vrot.lane.b32.xlu0 %v1527, 17
      %v2319 = vpop.permute.xlu0 %2318
      %2320 = vrot.lane.b32.xlu0 %v1532, 17
      %v2321 = vpop.permute.xlu0 %2320
      %2322 = vrot.lane.b32.xlu0 %v1537, 17
      %v2323 = vpop.permute.xlu0 %2322
      %2324 = vrot.lane.b32.xlu0 %v1542, 17
      %v2325 = vpop.permute.xlu0 %2324
      %2326 = vrot.lane.b32.xlu0 %v1547, 17
      %v2327 = vpop.permute.xlu0 %2326
      %2328 = vrot.lane.b32.xlu0 %v1552, 17
      %v2329 = vpop.permute.xlu0 %2328
      %2330 = vrot.lane.b32.xlu0 %v1557, 17
      %v2331 = vpop.permute.xlu0 %2330
      %2332 = vrot.lane.b32.xlu0 %v1562, 17
      %v2333 = vpop.permute.xlu0 %2332
      %2334 = vrot.lane.b32.xlu0 %v1567, 17
      %v2335 = vpop.permute.xlu0 %2334
      %2336 = vrot.lane.b32.xlu0 %v1572, 17
      %v2337 = vpop.permute.xlu0 %2336
      %2338 = vrot.lane.b32.xlu0 %v1577, 17
      %v2339 = vpop.permute.xlu0 %2338
      %2340 = vrot.lane.b32.xlu0 %v1582, 17
      %v2341 = vpop.permute.xlu0 %2340
      %2342 = vrot.lane.b32.xlu0 %v1587, 17
      %v2343 = vpop.permute.xlu0 %2342
      %2344 = vrot.lane.b32.xlu0 %v1592, 17
      %v2345 = vpop.permute.xlu0 %2344
      %2346 = vrot.lane.b32.xlu0 %v1597, 17
      %v2347 = vpop.permute.xlu0 %2346
      %2348 = vrot.lane.b32.xlu0 %v1602, 17
      %v2349 = vpop.permute.xlu0 %2348
      %2350 = vrot.lane.b32.xlu0 %v1607, 17
      %v2351 = vpop.permute.xlu0 %2350
      %2352 = vrot.lane.b32.xlu0 %v1612, 17
      %v2353 = vpop.permute.xlu0 %2352
      %2354 = vrot.lane.b32.xlu0 %v1617, 17
      %v2355 = vpop.permute.xlu0 %2354
      %2356 = vrot.lane.b32.xlu0 %v1622, 17
      %v2357 = vpop.permute.xlu0 %2356
      %2358 = vrot.lane.b32.xlu0 %v1627, 17
      %v2359 = vpop.permute.xlu0 %2358
      %2360 = vrot.lane.b32.xlu0 %v1632, 17
      %v2361 = vpop.permute.xlu0 %2360
      %2362 = vrot.lane.b32.xlu0 %v1637, 17
      %v2363 = vpop.permute.xlu0 %2362
      %2364 = vrot.lane.b32.xlu0 %v1642, 17
      %v2365 = vpop.permute.xlu0 %2364
      %2366 = vrot.lane.b32.xlu0 %v1647, 17
      %v2367 = vpop.permute.xlu0 %2366
      %2368 = vrot.lane.b32.xlu0 %v1652, 17
      %v2369 = vpop.permute.xlu0 %2368
      %2370 = vrot.lane.b32.xlu0 %v1657, 17
      %v2371 = vpop.permute.xlu0 %2370
      %2372 = vrot.lane.b32.xlu0 %v1662, 17
      %v2373 = vpop.permute.xlu0 %2372
      %2374 = vrot.lane.b32.xlu0 %v1667, 17
      %v2375 = vpop.permute.xlu0 %2374
      %2376 = vrot.lane.b32.xlu0 %v1672, 17
      %v2377 = vpop.permute.xlu0 %2376
      %2378 = vrot.lane.b32.xlu0 %v1677, 17
      %v2379 = vpop.permute.xlu0 %2378
      %2380 = vrot.lane.b32.xlu0 %v1682, 17
      %v2381 = vpop.permute.xlu0 %2380
      %2382 = vrot.lane.b32.xlu0 %v1687, 17
      %v2383 = vpop.permute.xlu0 %2382
      %2384 = vrot.lane.b32.xlu0 %v1692, 17
      %v2385 = vpop.permute.xlu0 %2384
      %2386 = vrot.lane.b32.xlu0 %v1697, 17
      %v2387 = vpop.permute.xlu0 %2386
      %2388 = vrot.lane.b32.xlu0 %v1702, 17
      %v2389 = vpop.permute.xlu0 %2388
      %2390 = vrot.lane.b32.xlu0 %v1707, 17
      %v2391 = vpop.permute.xlu0 %2390
      %2392 = vrot.lane.b32.xlu0 %v1712, 17
      %v2393 = vpop.permute.xlu0 %2392
      %2394 = vrot.lane.b32.xlu0 %v1717, 17
      %v2395 = vpop.permute.xlu0 %2394
      %2396 = vrot.lane.b32.xlu0 %v1722, 17
      %v2397 = vpop.permute.xlu0 %2396
      %2398 = vrot.lane.b32.xlu0 %v1727, 17
      %v2399 = vpop.permute.xlu0 %2398
      %2400 = vrot.lane.b32.xlu0 %v1732, 17
      %v2401 = vpop.permute.xlu0 %2400
      %2402 = vrot.lane.b32.xlu0 %v1737, 17
      %v2403 = vpop.permute.xlu0 %2402
      %2404 = vrot.lane.b32.xlu0 %v1742, 17
      %v2405 = vpop.permute.xlu0 %2404
      %2406 = vrot.lane.b32.xlu0 %v1747, 17
      %v2407 = vpop.permute.xlu0 %2406
      %2408 = vrot.lane.b32.xlu0 %v1752, 17
      %v2409 = vpop.permute.xlu0 %2408
      %2410 = vrot.lane.b32.xlu0 %v1757, 17
      %v2411 = vpop.permute.xlu0 %2410
      %2412 = vrot.lane.b32.xlu0 %v1762, 17
      %v2413 = vpop.permute.xlu0 %2412
      %2414 = vrot.lane.b32.xlu0 %v1767, 17
      %v2415 = vpop.permute.xlu0 %2414
      %2416 = vrot.lane.b32.xlu0 %v1772, 17
      %v2417 = vpop.permute.xlu0 %2416
      %2418 = vrot.lane.b32.xlu0 %v1777, 17
      %v2419 = vpop.permute.xlu0 %2418
      %v2484 = vadd.f32 %v2164, %v2293
      %v2485 = vadd.f32 %v2165, %v2295
      %v2486 = vadd.f32 %v2166, %v2297
      %v2487 = vadd.f32 %v2167, %v2299
      %v2488 = vadd.f32 %v2168, %v2301
      %v2489 = vadd.f32 %v2169, %v2303
      %v2490 = vadd.f32 %v2170, %v2305
      %v2491 = vadd.f32 %v2171, %v2307
      %v2492 = vadd.f32 %v2172, %v2309
      %v2493 = vadd.f32 %v2173, %v2311
      %v2494 = vadd.f32 %v2174, %v2313
      %v2495 = vadd.f32 %v2175, %v2315
      %v2496 = vadd.f32 %v2176, %v2317
      %v2497 = vadd.f32 %v2177, %v2319
      %v2498 = vadd.f32 %v2178, %v2321
      %v2499 = vadd.f32 %v2179, %v2323
      %v2500 = vadd.f32 %v2180, %v2325
      %v2501 = vadd.f32 %v2181, %v2327
      %v2502 = vadd.f32 %v2182, %v2329
      %v2503 = vadd.f32 %v2183, %v2331
      %v2504 = vadd.f32 %v2184, %v2333
      %v2505 = vadd.f32 %v2185, %v2335
      %v2506 = vadd.f32 %v2186, %v2337
      %v2507 = vadd.f32 %v2187, %v2339
      %v2508 = vadd.f32 %v2188, %v2341
      %v2509 = vadd.f32 %v2189, %v2343
      %v2510 = vadd.f32 %v2190, %v2345
      %v2511 = vadd.f32 %v2191, %v2347
      %v2512 = vadd.f32 %v2192, %v2349
      %v2513 = vadd.f32 %v2193, %v2351
      %v2514 = vadd.f32 %v2194, %v2353
      %v2515 = vadd.f32 %v2195, %v2355
      %v2516 = vadd.f32 %v2196, %v2357
      %v2517 = vadd.f32 %v2197, %v2359
      %v2518 = vadd.f32 %v2198, %v2361
      %v2519 = vadd.f32 %v2199, %v2363
      %v2520 = vadd.f32 %v2200, %v2365
      %v2521 = vadd.f32 %v2201, %v2367
      %v2522 = vadd.f32 %v2202, %v2369
      %v2523 = vadd.f32 %v2203, %v2371
      %v2524 = vadd.f32 %v2204, %v2373
      %v2525 = vadd.f32 %v2205, %v2375
      %v2526 = vadd.f32 %v2206, %v2377
      %v2527 = vadd.f32 %v2207, %v2379
      %v2528 = vadd.f32 %v2208, %v2381
      %v2529 = vadd.f32 %v2209, %v2383
      %v2530 = vadd.f32 %v2210, %v2385
      %v2531 = vadd.f32 %v2211, %v2387
      %v2532 = vadd.f32 %v2212, %v2389
      %v2533 = vadd.f32 %v2213, %v2391
      %v2534 = vadd.f32 %v2214, %v2393
      %v2535 = vadd.f32 %v2215, %v2395
      %v2536 = vadd.f32 %v2216, %v2397
      %v2537 = vadd.f32 %v2217, %v2399
      %v2538 = vadd.f32 %v2218, %v2401
      %v2539 = vadd.f32 %v2219, %v2403
      %v2540 = vadd.f32 %v2220, %v2405
      %v2541 = vadd.f32 %v2221, %v2407
      %v2542 = vadd.f32 %v2222, %v2409
      %v2543 = vadd.f32 %v2223, %v2411
      %v2544 = vadd.f32 %v2224, %v2413
      %v2545 = vadd.f32 %v2225, %v2415
      %v2546 = vadd.f32 %v2226, %v2417
      %v2547 = vadd.f32 %v2227, %v2419
      %2612 = vrot.lane.b32.xlu0 %v2484, 111
      %v2613 = vpop.permute.xlu0 %2612
      %2614 = vrot.lane.b32.xlu0 %v2485, 111
      %v2615 = vpop.permute.xlu0 %2614
      %2616 = vrot.lane.b32.xlu0 %v2486, 111
      %v2617 = vpop.permute.xlu0 %2616
      %2618 = vrot.lane.b32.xlu0 %v2487, 111
      %v2619 = vpop.permute.xlu0 %2618
      %2620 = vrot.lane.b32.xlu0 %v2488, 111
      %v2621 = vpop.permute.xlu0 %2620
      %2622 = vrot.lane.b32.xlu0 %v2489, 111
      %v2623 = vpop.permute.xlu0 %2622
      %2624 = vrot.lane.b32.xlu0 %v2490, 111
      %v2625 = vpop.permute.xlu0 %2624
      %2626 = vrot.lane.b32.xlu0 %v2491, 111
      %v2627 = vpop.permute.xlu0 %2626
      %2628 = vrot.lane.b32.xlu0 %v2492, 111
      %v2629 = vpop.permute.xlu0 %2628
      %2630 = vrot.lane.b32.xlu0 %v2493, 111
      %v2631 = vpop.permute.xlu0 %2630
      %2632 = vrot.lane.b32.xlu0 %v2494, 111
      %v2633 = vpop.permute.xlu0 %2632
      %2634 = vrot.lane.b32.xlu0 %v2495, 111
      %v2635 = vpop.permute.xlu0 %2634
      %2636 = vrot.lane.b32.xlu0 %v2496, 111
      %v2637 = vpop.permute.xlu0 %2636
      %2638 = vrot.lane.b32.xlu0 %v2497, 111
      %v2639 = vpop.permute.xlu0 %2638
      %2640 = vrot.lane.b32.xlu0 %v2498, 111
      %v2641 = vpop.permute.xlu0 %2640
      %2642 = vrot.lane.b32.xlu0 %v2499, 111
      %v2643 = vpop.permute.xlu0 %2642
      %2644 = vrot.lane.b32.xlu0 %v2500, 111
      %v2645 = vpop.permute.xlu0 %2644
      %2646 = vrot.lane.b32.xlu0 %v2501, 111
      %v2647 = vpop.permute.xlu0 %2646
      %2648 = vrot.lane.b32.xlu0 %v2502, 111
      %v2649 = vpop.permute.xlu0 %2648
      %2650 = vrot.lane.b32.xlu0 %v2503, 111
      %v2651 = vpop.permute.xlu0 %2650
      %2652 = vrot.lane.b32.xlu0 %v2504, 111
      %v2653 = vpop.permute.xlu0 %2652
      %2654 = vrot.lane.b32.xlu0 %v2505, 111
      %v2655 = vpop.permute.xlu0 %2654
      %2656 = vrot.lane.b32.xlu0 %v2506, 111
      %v2657 = vpop.permute.xlu0 %2656
      %2658 = vrot.lane.b32.xlu0 %v2507, 111
      %v2659 = vpop.permute.xlu0 %2658
      %2660 = vrot.lane.b32.xlu0 %v2508, 111
      %v2661 = vpop.permute.xlu0 %2660
      %2662 = vrot.lane.b32.xlu0 %v2509, 111
      %v2663 = vpop.permute.xlu0 %2662
      %2664 = vrot.lane.b32.xlu0 %v2510, 111
      %v2665 = vpop.permute.xlu0 %2664
      %2666 = vrot.lane.b32.xlu0 %v2511, 111
      %v2667 = vpop.permute.xlu0 %2666
      %2668 = vrot.lane.b32.xlu0 %v2512, 111
      %v2669 = vpop.permute.xlu0 %2668
      %2670 = vrot.lane.b32.xlu0 %v2513, 111
      %v2671 = vpop.permute.xlu0 %2670
      %2672 = vrot.lane.b32.xlu0 %v2514, 111
      %v2673 = vpop.permute.xlu0 %2672
      %2674 = vrot.lane.b32.xlu0 %v2515, 111
      %v2675 = vpop.permute.xlu0 %2674
      %2676 = vrot.lane.b32.xlu0 %v2516, 111
      %v2677 = vpop.permute.xlu0 %2676
      %2678 = vrot.lane.b32.xlu0 %v2517, 111
      %v2679 = vpop.permute.xlu0 %2678
      %2680 = vrot.lane.b32.xlu0 %v2518, 111
      %v2681 = vpop.permute.xlu0 %2680
      %2682 = vrot.lane.b32.xlu0 %v2519, 111
      %v2683 = vpop.permute.xlu0 %2682
      %2684 = vrot.lane.b32.xlu0 %v2520, 111
      %v2685 = vpop.permute.xlu0 %2684
      %2686 = vrot.lane.b32.xlu0 %v2521, 111
      %v2687 = vpop.permute.xlu0 %2686
      %2688 = vrot.lane.b32.xlu0 %v2522, 111
      %v2689 = vpop.permute.xlu0 %2688
      %2690 = vrot.lane.b32.xlu0 %v2523, 111
      %v2691 = vpop.permute.xlu0 %2690
      %2692 = vrot.lane.b32.xlu0 %v2524, 111
      %v2693 = vpop.permute.xlu0 %2692
      %2694 = vrot.lane.b32.xlu0 %v2525, 111
      %v2695 = vpop.permute.xlu0 %2694
      %2696 = vrot.lane.b32.xlu0 %v2526, 111
      %v2697 = vpop.permute.xlu0 %2696
      %2698 = vrot.lane.b32.xlu0 %v2527, 111
      %v2699 = vpop.permute.xlu0 %2698
      %2700 = vrot.lane.b32.xlu0 %v2528, 111
      %v2701 = vpop.permute.xlu0 %2700
      %2702 = vrot.lane.b32.xlu0 %v2529, 111
      %v2703 = vpop.permute.xlu0 %2702
      %2704 = vrot.lane.b32.xlu0 %v2530, 111
      %v2705 = vpop.permute.xlu0 %2704
      %2706 = vrot.lane.b32.xlu0 %v2531, 111
      %v2707 = vpop.permute.xlu0 %2706
      %2708 = vrot.lane.b32.xlu0 %v2532, 111
      %v2709 = vpop.permute.xlu0 %2708
      %2710 = vrot.lane.b32.xlu0 %v2533, 111
      %v2711 = vpop.permute.xlu0 %2710
      %2712 = vrot.lane.b32.xlu0 %v2534, 111
      %v2713 = vpop.permute.xlu0 %2712
      %2714 = vrot.lane.b32.xlu0 %v2535, 111
      %v2715 = vpop.permute.xlu0 %2714
      %2716 = vrot.lane.b32.xlu0 %v2536, 111
      %v2717 = vpop.permute.xlu0 %2716
      %2718 = vrot.lane.b32.xlu0 %v2537, 111
      %v2719 = vpop.permute.xlu0 %2718
      %2720 = vrot.lane.b32.xlu0 %v2538, 111
      %v2721 = vpop.permute.xlu0 %2720
      %2722 = vrot.lane.b32.xlu0 %v2539, 111
      %v2723 = vpop.permute.xlu0 %2722
      %2724 = vrot.lane.b32.xlu0 %v2540, 111
      %v2725 = vpop.permute.xlu0 %2724
      %2726 = vrot.lane.b32.xlu0 %v2541, 111
      %v2727 = vpop.permute.xlu0 %2726
      %2728 = vrot.lane.b32.xlu0 %v2542, 111
      %v2729 = vpop.permute.xlu0 %2728
      %2730 = vrot.lane.b32.xlu0 %v2543, 111
      %v2731 = vpop.permute.xlu0 %2730
      %2732 = vrot.lane.b32.xlu0 %v2544, 111
      %v2733 = vpop.permute.xlu0 %2732
      %2734 = vrot.lane.b32.xlu0 %v2545, 111
      %v2735 = vpop.permute.xlu0 %2734
      %2736 = vrot.lane.b32.xlu0 %v2546, 111
      %v2737 = vpop.permute.xlu0 %2736
      %2738 = vrot.lane.b32.xlu0 %v2547, 111
      %v2739 = vpop.permute.xlu0 %2738
      %vm2804 = vcmask 15360
      %2805 = vst.msk [vmem:[%s199] sm:$0xff] %vm2804, %v2613
      %2806 = vst.msk [vmem:[%s199 + $0x8] sm:$0xff] %vm2804, %v2615
      %2807 = vst.msk [vmem:[%s199 + $0x10] sm:$0xff] %vm2804, %v2617
      %2808 = vst.msk [vmem:[%s199 + $0x18] sm:$0xff] %vm2804, %v2619
      %2809 = vst.msk [vmem:[%s199 + $0x20] sm:$0xff] %vm2804, %v2621
      %2810 = vst.msk [vmem:[%s199 + $0x28] sm:$0xff] %vm2804, %v2623
      %2811 = vst.msk [vmem:[%s199 + $0x30] sm:$0xff] %vm2804, %v2625
      %2812 = vst.msk [vmem:[%s199 + $0x38] sm:$0xff] %vm2804, %v2627
      %2813 = vst.msk [vmem:[%s199 + $0x40] sm:$0xff] %vm2804, %v2629
      %2814 = vst.msk [vmem:[%s199 + $0x48] sm:$0xff] %vm2804, %v2631
      %2815 = vst.msk [vmem:[%s199 + $0x50] sm:$0xff] %vm2804, %v2633
      %2816 = vst.msk [vmem:[%s199 + $0x58] sm:$0xff] %vm2804, %v2635
      %2817 = vst.msk [vmem:[%s199 + $0x60] sm:$0xff] %vm2804, %v2637
      %2818 = vst.msk [vmem:[%s199 + $0x68] sm:$0xff] %vm2804, %v2639
      %2819 = vst.msk [vmem:[%s199 + $0x70] sm:$0xff] %vm2804, %v2641
      %2820 = vst.msk [vmem:[%s199 + $0x78] sm:$0xff] %vm2804, %v2643
      %2821 = vst.msk [vmem:[%s199 + $0x80] sm:$0xff] %vm2804, %v2645
      %2822 = vst.msk [vmem:[%s199 + $0x88] sm:$0xff] %vm2804, %v2647
      %2823 = vst.msk [vmem:[%s199 + $0x90] sm:$0xff] %vm2804, %v2649
      %2824 = vst.msk [vmem:[%s199 + $0x98] sm:$0xff] %vm2804, %v2651
      %2825 = vst.msk [vmem:[%s199 + $0xa0] sm:$0xff] %vm2804, %v2653
      %2826 = vst.msk [vmem:[%s199 + $0xa8] sm:$0xff] %vm2804, %v2655
      %2827 = vst.msk [vmem:[%s199 + $0xb0] sm:$0xff] %vm2804, %v2657
      %2828 = vst.msk [vmem:[%s199 + $0xb8] sm:$0xff] %vm2804, %v2659
      %2829 = vst.msk [vmem:[%s199 + $0xc0] sm:$0xff] %vm2804, %v2661
      %2830 = vst.msk [vmem:[%s199 + $0xc8] sm:$0xff] %vm2804, %v2663
      %2831 = vst.msk [vmem:[%s199 + $0xd0] sm:$0xff] %vm2804, %v2665
      %2832 = vst.msk [vmem:[%s199 + $0xd8] sm:$0xff] %vm2804, %v2667
      %2833 = vst.msk [vmem:[%s199 + $0xe0] sm:$0xff] %vm2804, %v2669
      %2834 = vst.msk [vmem:[%s199 + $0xe8] sm:$0xff] %vm2804, %v2671
      %2835 = vst.msk [vmem:[%s199 + $0xf0] sm:$0xff] %vm2804, %v2673
      %2836 = vst.msk [vmem:[%s199 + $0xf8] sm:$0xff] %vm2804, %v2675
      %2837 = vst.msk [vmem:[%s199 + $0x100] sm:$0xff] %vm2804, %v2677
      %2838 = vst.msk [vmem:[%s199 + $0x108] sm:$0xff] %vm2804, %v2679
      %2839 = vst.msk [vmem:[%s199 + $0x110] sm:$0xff] %vm2804, %v2681
      %2840 = vst.msk [vmem:[%s199 + $0x118] sm:$0xff] %vm2804, %v2683
      %2841 = vst.msk [vmem:[%s199 + $0x120] sm:$0xff] %vm2804, %v2685
      %2842 = vst.msk [vmem:[%s199 + $0x128] sm:$0xff] %vm2804, %v2687
      %2843 = vst.msk [vmem:[%s199 + $0x130] sm:$0xff] %vm2804, %v2689
      %2844 = vst.msk [vmem:[%s199 + $0x138] sm:$0xff] %vm2804, %v2691
      %2845 = vst.msk [vmem:[%s199 + $0x140] sm:$0xff] %vm2804, %v2693
      %2846 = vst.msk [vmem:[%s199 + $0x148] sm:$0xff] %vm2804, %v2695
      %2847 = vst.msk [vmem:[%s199 + $0x150] sm:$0xff] %vm2804, %v2697
      %2848 = vst.msk [vmem:[%s199 + $0x158] sm:$0xff] %vm2804, %v2699
      %2849 = vst.msk [vmem:[%s199 + $0x160] sm:$0xff] %vm2804, %v2701
      %2850 = vst.msk [vmem:[%s199 + $0x168] sm:$0xff] %vm2804, %v2703
      %2851 = vst.msk [vmem:[%s199 + $0x170] sm:$0xff] %vm2804, %v2705
      %2852 = vst.msk [vmem:[%s199 + $0x178] sm:$0xff] %vm2804, %v2707
      %2853 = vst.msk [vmem:[%s199 + $0x180] sm:$0xff] %vm2804, %v2709
      %2854 = vst.msk [vmem:[%s199 + $0x188] sm:$0xff] %vm2804, %v2711
      %2855 = vst.msk [vmem:[%s199 + $0x190] sm:$0xff] %vm2804, %v2713
      %2856 = vst.msk [vmem:[%s199 + $0x198] sm:$0xff] %vm2804, %v2715
      %2857 = vst.msk [vmem:[%s199 + $0x1a0] sm:$0xff] %vm2804, %v2717
      %2858 = vst.msk [vmem:[%s199 + $0x1a8] sm:$0xff] %vm2804, %v2719
      %2859 = vst.msk [vmem:[%s199 + $0x1b0] sm:$0xff] %vm2804, %v2721
      %2860 = vst.msk [vmem:[%s199 + $0x1b8] sm:$0xff] %vm2804, %v2723
      %2861 = vst.msk [vmem:[%s199 + $0x1c0] sm:$0xff] %vm2804, %v2725
      %2862 = vst.msk [vmem:[%s199 + $0x1c8] sm:$0xff] %vm2804, %v2727
      %2863 = vst.msk [vmem:[%s199 + $0x1d0] sm:$0xff] %vm2804, %v2729
      %2864 = vst.msk [vmem:[%s199 + $0x1d8] sm:$0xff] %vm2804, %v2731
      %2865 = vst.msk [vmem:[%s199 + $0x1e0] sm:$0xff] %vm2804, %v2733
      %2866 = vst.msk [vmem:[%s199 + $0x1e8] sm:$0xff] %vm2804, %v2735
      %2867 = vst.msk [vmem:[%s199 + $0x1f0] sm:$0xff] %vm2804, %v2737
      %2868 = vst.msk [vmem:[%s199 + $0x1f8] sm:$0xff] %vm2804, %v2739
      %s2869 = smul.u32 64, %s15
      %p2870 = scmp.lt.s32.totalorder %s2869, 127
      %s2871 = scalar_select %p2870, %s2869, 127
      %s2872 = smul.addr %s2871, 8
      %s2873 = scalar_lea.vmem %s4, %s2872
      // Predicated region
      $region37: #{tpu_custom_call.1} parent=35 // pred_check
        %p2874 = pneg %p122
      $region38: #{tpu_custom_call.1} parent=35 // pred_check_branch
        %2876 = sbr.rel (%p2874) target = $region40
      $region39: #{tpu_custom_call.1} parent=35 // pred_region
        %s2877 = smul.u32 64, %s15
      $region40: #{tpu_custom_call.1} parent=35 // pred_fallthru
        _
    $region36: #{tpu_custom_call.1} parent=5 // pred_fallthru
      _
    %p2878 = scmp.le.s32.totalorder 2, %s10
    // Predicated region
    $region41: #{tpu_custom_call.1} parent=5 // pred_check
      %p2879 = pneg %p2878
    $region42: #{tpu_custom_call.1} parent=5 // pred_check_branch
      %2881 = sbr.rel (%p2879) target = $region44
    $region43: #{tpu_custom_call.1} parent=5 // pred_region
      %s2882 = ssub.s32 %s10, 2
      // Predicated region
      $region45: #{tpu_custom_call.1} parent=43 // pred_check
        %p2883 = pneg %p128
      $region46: #{tpu_custom_call.1} parent=43 // pred_check_branch
        %2885 = sbr.rel (%p2883) target = $region48
      $region47: #{tpu_custom_call.1} parent=43 // pred_region
        %s2886 = smul.u32 64, %s16
        %p2887 = scmp.lt.s32.totalorder %s2886, 127
        %s2888 = scalar_select %p2887, %s2886, 127
        %s2889 = smul.addr %s2888, 8
        %s2890 = scalar_lea.vmem %s4, %s2889
      $region48: #{tpu_custom_call.1} parent=43 // pred_fallthru
        _
    $region44: #{tpu_custom_call.1} parent=5 // pred_fallthru
      _
  $region6: #{tpu_custom_call.1} parent=0 // loop_footer
    %s14 = sadd.s32 1, %s10
  $region7: #{tpu_custom_call.1} parent=0 // loop_footer_branch
    %9 = sbr.rel target = $region3
  $region8: #{tpu_custom_call.1} parent=0 // loop_exit
    _

</llo_original>
